<compile_context>
chip_gen: v7x
topology: tpu7x:2x2x1
jax: 0.10.0
libtpu: 0.0.40
codegen_flags: <defaults>
</compile_context>

<pallas_src>
import jax
import jax.numpy as jnp
from jax.experimental import pallas as pl
from jax.experimental.pallas import tpu as pltpu

BN_EPS = 1e-5


def _round_up(x, m):
    return (x + m - 1) // m * m


def _pick_batch_tile(batch, per_image_bytes, budget_bytes):
    """Largest batch-tile (divisor of batch) fitting the VMEM budget; prefer
    keeping >= 2 grid tiles so the "parallel" axis can use both v7x cores."""
    divisors = [d for d in range(1, batch + 1) if batch % d == 0]
    cap = max(1, batch // 2)
    fitting = [d for d in divisors if d * per_image_bytes <= budget_bytes]
    preferred = [d for d in fitting if d <= cap]
    if preferred:
        return max(preferred)
    return max(fitting) if fitting else 1


# ----------------------------------------------------------------------------
# Pass 1: Conv3x3 (pad=1) + per-tile partial BN statistics
# ----------------------------------------------------------------------------
def _conv_stats_kernel(x_ref, w_ref, y_ref, sum_ref, sumsq_ref):
    """One batch-tile of images.

    x_ref     : [Bt, H+2, W+2, Cin]   bf16 zero-padded activations (halo inside)
    w_ref     : [3, 3*Cin, Cout_p]    bf16 taps; row dy, col = dx*Cin + cin
    y_ref     : [Bt*H*W, Cout_p]      bf16 conv stash (bias omitted: BN cancels it)
    sum_ref   : [1, Cout_p]           f32 per-tile partial sum
    sumsq_ref : [1, Cout_p]           f32 per-tile partial sum of squares
    """
    Bt, Hp, Wp, Cin = x_ref.shape
    H, W = Hp - 2, Wp - 2
    rows, cout = y_ref.shape

    x = x_ref[...]
    # dx-axis im2col ONCE per tile: concat the 3 dx shifts into the channel axis.
    xcat = jnp.concatenate(
        [x[:, :, 0:W, :], x[:, :, 1:W + 1, :], x[:, :, 2:W + 2, :]], axis=-1)
    # xcat: [Bt, H+2, W, 3*Cin]

    acc = jnp.zeros((rows, cout), jnp.float32)
    for dy in range(3):
        # dy slice is along a non-minor axis (cheap); reshape keeps the lane dim.
        xs = xcat[:, dy:dy + H, :, :].reshape(rows, 3 * Cin)
        acc = acc + jnp.dot(xs, w_ref[dy], preferred_element_type=jnp.float32)

    y_ref[...] = acc.astype(y_ref.dtype)
    # Per-channel partial stats on the XLU (keeps the MXU exclusively on the conv).
    sum_ref[...] = jnp.sum(acc, axis=0, keepdims=True)
    sumsq_ref[...] = jnp.sum(acc * acc, axis=0, keepdims=True)


# ----------------------------------------------------------------------------
# Pass 2: normalize + ReLU (elementwise, lane-dense)
# ----------------------------------------------------------------------------
def _bn_relu_kernel(y_ref, scale_ref, shift_ref, o_ref):
    y = y_ref[...].astype(jnp.float32)
    o_ref[...] = jnp.maximum(y * scale_ref[...] + shift_ref[...], 0.0)


# ----------------------------------------------------------------------------
# Wrapper (PyTorch Unit.forward semantics, NCHW in / NCHW out, f32)
# ----------------------------------------------------------------------------
def unit_forward(x_nchw, w_oihw, conv_bias, gamma, beta, *, eps=BN_EPS):
    """x: [B, Cin, H, W] f32, w: [Cout, Cin, 3, 3] f32 -> [B, Cout, H, W] f32.

    `conv_bias` is accepted for interface parity with nn.Conv2d but is a
    mathematical no-op under training-mode BatchNorm (mean subtraction).
    """
    del conv_bias
    B, Cin, H, W = x_nchw.shape
    Cout = w_oihw.shape[0]
    Hp, Wp, HW = H + 2, W + 2, H * W
    Cout_p = _round_up(Cout, 128)  # lane-dense epilogue + unmasked stores

    # ---- VMEM budget & batch-tile selection (v7x only has 64 MiB / TC) ----
    try:
        vmem_cap = int(pltpu.get_tpu_info().vmem_capacity_bytes)
    except Exception:  # pragma: no cover - conservative fallback
        vmem_cap = 64 * 2 ** 20
    fixed_bytes = (2 * (3 * 3 * Cin * Cout_p * 2)     # weights (double-buffered)
                   + 8 * Cout_p * 4                   # stat blocks
                   + (1 << 20))                       # misc slack
    per_image = (2 * Hp * Wp * Cin * 2                # padded x block, 2 buffers
                 + Hp * W * 3 * Cin * 2               # dx-im2col temp (bf16)
                 + HW * 9 * Cin * 2                   # slice copies (bf16)
                 + 2 * HW * Cout_p * 4                # f32 acc + acc*acc temp
                 + 2 * HW * Cout_p * 2)               # bf16 stash block, 2 buffers
    budget = max(per_image, int(min(0.4 * vmem_cap, 48 * 2 ** 20)) - fixed_bytes)
    # TODO(synk): if a single image ever exceeds the budget, switch to H row-strip
    # tiles (1-row halo) instead of whole-image tiles.
    Bt = _pick_batch_tile(B, per_image, budget)
    T = B // Bt
    rows = Bt * HW

    # ---- data prep: NCHW->NHWC bf16 + halo pad (one fused XLA pre-pass) ----
    # TODO(synk): in a multi-layer pipeline keep activations NHWC bf16 and move
    # halo handling in-kernel to drop this transpose/cast/pad HBM pass.
    x = jnp.transpose(x_nchw, (0, 2, 3, 1)).astype(jnp.bfloat16)
    xp = jnp.pad(x, ((0, 0), (1, 1), (1, 1), (0, 0)))
    # OIHW -> [dy, dx*Cin + cin, cout], zero-padded output channels.
    w = jnp.transpose(w_oihw, (2, 3, 1, 0)).reshape(3, 3 * Cin, Cout)
    w = jnp.pad(w, ((0, 0), (0, 0), (0, Cout_p - Cout))).astype(jnp.bfloat16)

    needed1 = fixed_bytes + Bt * per_image
    vmem1 = int(min(0.8 * vmem_cap, max(8 * 2 ** 20, 2 * needed1)))

    conv_bf16, psum, psumsq = pl.pallas_call(
        _conv_stats_kernel,
        out_shape=(jax.ShapeDtypeStruct((T, rows, Cout_p), jnp.bfloat16),
                   jax.ShapeDtypeStruct((T, 1, Cout_p), jnp.float32),
                   jax.ShapeDtypeStruct((T, 1, Cout_p), jnp.float32)),
        grid=(T,),
        in_specs=[
            pl.BlockSpec((Bt, Hp, Wp, Cin), lambda t: (t, 0, 0, 0)),
            pl.BlockSpec((3, 3 * Cin, Cout_p), lambda t: (0, 0, 0)),
        ],
        out_specs=(
            pl.BlockSpec((None, rows, Cout_p), lambda t: (t, 0, 0)),
            pl.BlockSpec((None, 1, Cout_p), lambda t: (t, 0, 0)),
            pl.BlockSpec((None, 1, Cout_p), lambda t: (t, 0, 0)),
        ),
        compiler_params=pltpu.CompilerParams(
            dimension_semantics=("parallel",),   # per-tile partial stats => no
            vmem_limit_bytes=vmem1),             # cross-tile reduction in-kernel
    )(xp, w)

    # ---- tiny cross-tile stats combine (keeps the kernel grids megacore-parallel)
    n = float(B * HW)
    s = jnp.sum(psum, axis=0)                     # [1, Cout_p]
    ss = jnp.sum(psumsq, axis=0)                  # [1, Cout_p]
    mean = s / n
    var = jnp.maximum(ss / n - mean * mean, 0.0)  # biased var (PyTorch training BN)
    gamma_p = jnp.pad(gamma.astype(jnp.float32), (0, Cout_p - Cout)).reshape(1, Cout_p)
    beta_p = jnp.pad(beta.astype(jnp.float32), (0, Cout_p - Cout)).reshape(1, Cout_p)
    scale = gamma_p * jax.lax.rsqrt(var + eps)
    shift = beta_p - mean * scale

    needed2 = rows * Cout_p * (2 * 2 + 2 * 4) + 8 * Cout_p * 4 + (1 << 20)
    vmem2 = int(min(0.8 * vmem_cap, max(8 * 2 ** 20, 2 * needed2)))

    out = pl.pallas_call(
        _bn_relu_kernel,
        out_shape=jax.ShapeDtypeStruct((T, rows, Cout_p), jnp.float32),
        grid=(T,),
        in_specs=[
            pl.BlockSpec((None, rows, Cout_p), lambda t: (t, 0, 0)),
            pl.BlockSpec((1, Cout_p), lambda t: (0, 0)),
            pl.BlockSpec((1, Cout_p), lambda t: (0, 0)),
        ],
        out_specs=pl.BlockSpec((None, rows, Cout_p), lambda t: (t, 0, 0)),
        compiler_params=pltpu.CompilerParams(
            dimension_semantics=("parallel",),
            vmem_limit_bytes=vmem2),
    )(conv_bf16, scale, shift)

    out = out.reshape(B, H, W, Cout_p)[..., :Cout]
    return jnp.transpose(out, (0, 3, 1, 2))


# ----------------------------------------------------------------------------
# Pure-JAX f32 reference (PyTorch Unit semantics) for a tolerance check
# ----------------------------------------------------------------------------
def unit_reference(x_nchw, w_oihw, conv_bias, gamma, beta, eps=BN_EPS):
    conv = jax.lax.conv_general_dilated(
        x_nchw, w_oihw, window_strides=(1, 1), padding=((1, 1), (1, 1)),
        dimension_numbers=("NCHW", "OIHW", "NCHW"))
    conv = conv + conv_bias[None, :, None, None]
    mean = jnp.mean(conv, axis=(0, 2, 3), keepdims=True)
    var = jnp.mean((conv - mean) ** 2, axis=(0, 2, 3), keepdims=True)
    y = (conv - mean) * jax.lax.rsqrt(var + eps)
    y = y * gamma[None, :, None, None] + beta[None, :, None, None]
    return jnp.maximum(y, 0.0)


# ----------------------------------------------------------------------------
if __name__ == "__main__":
    key = jax.random.PRNGKey(0)
    kx, kw, kb, kg, kbt = jax.random.split(key, 5)

    B, Cin, H, W, Cout = 2, 4, 16, 16, 32
    x = jax.random.normal(kx, (B, Cin, H, W), jnp.float32)
    w = jax.random.normal(kw, (Cout, Cin, 3, 3), jnp.float32) / jnp.sqrt(9.0 * Cin)
    conv_bias = jax.random.normal(kb, (Cout,), jnp.float32) * 0.1  # BN no-op
    gamma = 1.0 + 0.1 * jax.random.normal(kg, (Cout,), jnp.float32)
    beta = 0.1 * jax.random.normal(kbt, (Cout,), jnp.float32)

    fwd = jax.jit(unit_forward)
    out = fwd(x, w, conv_bias, gamma, beta)
    jax.block_until_ready(out)

    assert out.shape == (B, Cout, H, W), out.shape
    assert bool(jnp.all(jnp.isfinite(out)))

    ref = unit_reference(x, w, conv_bias, gamma, beta)
    max_err = float(jnp.max(jnp.abs(out - ref)))
    # bf16 MXU operands + bf16 conv stash -> few-1e-3-level deviation vs f32 ref.
    assert max_err < 1e-1, f"max abs err vs reference: {max_err}"
    print("KERNEL_OK")
</pallas_src>

<mosaic_0001>
module attributes {stable_mosaic.version = 11 : i64} {
  func.func @_conv_stats_kernel(%arg0: i32, %arg1: memref<1x18x18x4xbf16, #tpu.memory_space<vmem>>, %arg2: memref<3x12x128xbf16, #tpu.memory_space<vmem>>, %arg3: memref<1x256x128xbf16, #tpu.memory_space<vmem>>, %arg4: memref<1x1x128xf32, #tpu.memory_space<vmem>>, %arg5: memref<1x1x128xf32, #tpu.memory_space<vmem>>) attributes {dimension_semantics = [#tpu.dimension_semantics<parallel>], iteration_bounds = array<i64: 2>, scalar_prefetch = 0 : i64, scratch_operands = 0 : i64, tpu.core_type = #tpu.core_type<tc>, window_params = [{transform_indices = @transform_0, window_bounds = array<i64: 1, 18, 18, 4>}, {pipeline_mode = #tpu.pipeline_mode<synchronous>, transform_indices = @transform_1, window_bounds = array<i64: 3, 12, 128>}, {transform_indices = @transform_2, window_bounds = array<i64: 1, 256, 128>}, {transform_indices = @transform_3, window_bounds = array<i64: 1, 1, 128>}, {transform_indices = @transform_4, window_bounds = array<i64: 1, 1, 128>}]} {
    %c0 = arith.constant 0 : index
    %c0_0 = arith.constant 0 : index
    %c0_1 = arith.constant 0 : index
    %c0_2 = arith.constant 0 : index
    %0 = vector.load %arg1[%c0, %c0_0, %c0_1, %c0_2] : memref<1x18x18x4xbf16, #tpu.memory_space<vmem>>, vector<1x18x18x4xbf16>
    %1 = vector.extract_strided_slice %0 {offsets = [0, 0, 0, 0], sizes = [1, 18, 16, 4], strides = [1, 1, 1, 1]} : vector<1x18x18x4xbf16> to vector<1x18x16x4xbf16>
    %2 = vector.extract_strided_slice %0 {offsets = [0, 0, 1, 0], sizes = [1, 18, 16, 4], strides = [1, 1, 1, 1]} : vector<1x18x18x4xbf16> to vector<1x18x16x4xbf16>
    %3 = vector.extract_strided_slice %0 {offsets = [0, 0, 2, 0], sizes = [1, 18, 16, 4], strides = [1, 1, 1, 1]} : vector<1x18x18x4xbf16> to vector<1x18x16x4xbf16>
    %4 = tpu.concatenate %1, %2, %3 in 3 : vector<1x18x16x4xbf16>, vector<1x18x16x4xbf16>, vector<1x18x16x4xbf16> -> vector<1x18x16x12xbf16>
    %cst = arith.constant 0.000000e+00 : f32
    %5 = vector.broadcast %cst : f32 to vector<256x128xf32>
    %6 = vector.extract_strided_slice %4 {offsets = [0, 0, 0, 0], sizes = [1, 16, 16, 12], strides = [1, 1, 1, 1]} : vector<1x18x16x12xbf16> to vector<1x16x16x12xbf16>
    %7 = vector.shape_cast %6 : vector<1x16x16x12xbf16> to vector<256x12xbf16>
    %c0_3 = arith.constant 0 : index
    %c0_4 = arith.constant 0 : index
    %c0_5 = arith.constant 0 : index
    %8 = vector.load %arg2[%c0_3, %c0_4, %c0_5] : memref<3x12x128xbf16, #tpu.memory_space<vmem>>, vector<1x12x128xbf16>
    %9 = vector.shape_cast %8 : vector<1x12x128xbf16> to vector<12x128xbf16>
    %cst_6 = arith.constant dense<0.000000e+00> : vector<256x128xf32>
    %10 = tpu.matmul %7, %9, %cst_6 {dimension_numbers = #tpu.dot_dimension_numbers<[1], [0], [0], [1], [0, 0, 1, 1], [], []>} : vector<256x12xbf16>, vector<12x128xbf16>, vector<256x128xf32> -> vector<256x128xf32>
    %11 = arith.addf %5, %10 : vector<256x128xf32>
    %12 = vector.extract_strided_slice %4 {offsets = [0, 1, 0, 0], sizes = [1, 16, 16, 12], strides = [1, 1, 1, 1]} : vector<1x18x16x12xbf16> to vector<1x16x16x12xbf16>
    %13 = vector.shape_cast %12 : vector<1x16x16x12xbf16> to vector<256x12xbf16>
    %c1 = arith.constant 1 : index
    %c0_7 = arith.constant 0 : index
    %c0_8 = arith.constant 0 : index
    %14 = vector.load %arg2[%c1, %c0_7, %c0_8] : memref<3x12x128xbf16, #tpu.memory_space<vmem>>, vector<1x12x128xbf16>
    %15 = vector.shape_cast %14 : vector<1x12x128xbf16> to vector<12x128xbf16>
    %cst_9 = arith.constant dense<0.000000e+00> : vector<256x128xf32>
    %16 = tpu.matmul %13, %15, %cst_9 {dimension_numbers = #tpu.dot_dimension_numbers<[1], [0], [0], [1], [0, 0, 1, 1], [], []>} : vector<256x12xbf16>, vector<12x128xbf16>, vector<256x128xf32> -> vector<256x128xf32>
    %17 = arith.addf %11, %16 : vector<256x128xf32>
    %18 = vector.extract_strided_slice %4 {offsets = [0, 2, 0, 0], sizes = [1, 16, 16, 12], strides = [1, 1, 1, 1]} : vector<1x18x16x12xbf16> to vector<1x16x16x12xbf16>
    %19 = vector.shape_cast %18 : vector<1x16x16x12xbf16> to vector<256x12xbf16>
    %c2 = arith.constant 2 : index
    %c0_10 = arith.constant 0 : index
    %c0_11 = arith.constant 0 : index
    %20 = vector.load %arg2[%c2, %c0_10, %c0_11] : memref<3x12x128xbf16, #tpu.memory_space<vmem>>, vector<1x12x128xbf16>
    %21 = vector.shape_cast %20 : vector<1x12x128xbf16> to vector<12x128xbf16>
    %cst_12 = arith.constant dense<0.000000e+00> : vector<256x128xf32>
    %22 = tpu.matmul %19, %21, %cst_12 {dimension_numbers = #tpu.dot_dimension_numbers<[1], [0], [0], [1], [0, 0, 1, 1], [], []>} : vector<256x12xbf16>, vector<12x128xbf16>, vector<256x128xf32> -> vector<256x128xf32>
    %23 = arith.addf %17, %22 : vector<256x128xf32>
    %24 = arith.truncf %23 : vector<256x128xf32> to vector<256x128xbf16>
    %c0_13 = arith.constant 0 : index
    %c0_14 = arith.constant 0 : index
    %c0_15 = arith.constant 0 : index
    %25 = vector.load %arg3[%c0_13, %c0_14, %c0_15] : memref<1x256x128xbf16, #tpu.memory_space<vmem>>, vector<1x256x128xbf16>
    %26 = vector.shape_cast %25 : vector<1x256x128xbf16> to vector<256x128xbf16>
    %27 = vector.shape_cast %24 : vector<256x128xbf16> to vector<1x256x128xbf16>
    tpu.vector_store %arg3[%c0_13, %c0_14, %c0_15], %27 {strides = array<i32>} : memref<1x256x128xbf16, #tpu.memory_space<vmem>>, vector<1x256x128xbf16>,
    %cst_16 = arith.constant dense<0.000000e+00> : vector<128xf32>
    %28 = vector.multi_reduction <add>, %23, %cst_16 [0] : vector<256x128xf32> to vector<128xf32>
    %29 = vector.shape_cast %28 : vector<128xf32> to vector<1x128xf32>
    %c0_17 = arith.constant 0 : index
    %c0_18 = arith.constant 0 : index
    %c0_19 = arith.constant 0 : index
    %30 = vector.load %arg4[%c0_17, %c0_18, %c0_19] : memref<1x1x128xf32, #tpu.memory_space<vmem>>, vector<1x1x128xf32>
    %31 = vector.shape_cast %30 : vector<1x1x128xf32> to vector<1x128xf32>
    %32 = vector.shape_cast %29 : vector<1x128xf32> to vector<1x1x128xf32>
    tpu.vector_store %arg4[%c0_17, %c0_18, %c0_19], %32 {strides = array<i32>} : memref<1x1x128xf32, #tpu.memory_space<vmem>>, vector<1x1x128xf32>,
    %33 = arith.mulf %23, %23 : vector<256x128xf32>
    %cst_20 = arith.constant dense<0.000000e+00> : vector<128xf32>
    %34 = vector.multi_reduction <add>, %33, %cst_20 [0] : vector<256x128xf32> to vector<128xf32>
    %35 = vector.shape_cast %34 : vector<128xf32> to vector<1x128xf32>
    %c0_21 = arith.constant 0 : index
    %c0_22 = arith.constant 0 : index
    %c0_23 = arith.constant 0 : index
    %36 = vector.load %arg5[%c0_21, %c0_22, %c0_23] : memref<1x1x128xf32, #tpu.memory_space<vmem>>, vector<1x1x128xf32>
    %37 = vector.shape_cast %36 : vector<1x1x128xf32> to vector<1x128xf32>
    %38 = vector.shape_cast %35 : vector<1x128xf32> to vector<1x1x128xf32>
    tpu.vector_store %arg5[%c0_21, %c0_22, %c0_23], %38 {strides = array<i32>} : memref<1x1x128xf32, #tpu.memory_space<vmem>>, vector<1x1x128xf32>,
    return
  }
  func.func @transform_0(%arg0: i32) -> (i32, i32, i32, i32) {
    %c0_i32 = arith.constant 0 : i32
    %c0_i32_0 = arith.constant 0 : i32
    %c0_i32_1 = arith.constant 0 : i32
    %c0_i32_2 = arith.constant 0 : i32
    return %arg0, %c0_i32, %c0_i32_0, %c0_i32_1 : i32, i32, i32, i32
  }
  func.func @transform_1(%arg0: i32) -> (i32, i32, i32) {
    %c0_i32 = arith.constant 0 : i32
    %c0_i32_0 = arith.constant 0 : i32
    %c0_i32_1 = arith.constant 0 : i32
    %c0_i32_2 = arith.constant 0 : i32
    return %c0_i32, %c0_i32_0, %c0_i32_1 : i32, i32, i32
  }
  func.func @transform_2(%arg0: i32) -> (i32, i32, i32) {
    %c0_i32 = arith.constant 0 : i32
    %c0_i32_0 = arith.constant 0 : i32
    %c0_i32_1 = arith.constant 0 : i32
    return %arg0, %c0_i32, %c0_i32_0 : i32, i32, i32
  }
  func.func @transform_3(%arg0: i32) -> (i32, i32, i32) {
    %c0_i32 = arith.constant 0 : i32
    %c0_i32_0 = arith.constant 0 : i32
    %c0_i32_1 = arith.constant 0 : i32
    return %arg0, %c0_i32, %c0_i32_0 : i32, i32, i32
  }
  func.func @transform_4(%arg0: i32) -> (i32, i32, i32) {
    %c0_i32 = arith.constant 0 : i32
    %c0_i32_0 = arith.constant 0 : i32
    %c0_i32_1 = arith.constant 0 : i32
    return %arg0, %c0_i32, %c0_i32_0 : i32, i32, i32
  }
}

module attributes {stable_mosaic.version = 11 : i64} {
  func.func @_bn_relu_kernel(%arg0: i32, %arg1: memref<1x256x128xbf16, #tpu.memory_space<vmem>>, %arg2: memref<1x128xf32, #tpu.memory_space<vmem>>, %arg3: memref<1x128xf32, #tpu.memory_space<vmem>>, %arg4: memref<1x256x128xf32, #tpu.memory_space<vmem>>) attributes {dimension_semantics = [#tpu.dimension_semantics<parallel>], iteration_bounds = array<i64: 2>, scalar_prefetch = 0 : i64, scratch_operands = 0 : i64, tpu.core_type = #tpu.core_type<tc>, window_params = [{transform_indices = @transform_0, window_bounds = array<i64: 1, 256, 128>}, {pipeline_mode = #tpu.pipeline_mode<synchronous>, transform_indices = @transform_1, window_bounds = array<i64: 1, 128>}, {pipeline_mode = #tpu.pipeline_mode<synchronous>, transform_indices = @transform_2, window_bounds = array<i64: 1, 128>}, {transform_indices = @transform_3, window_bounds = array<i64: 1, 256, 128>}]} {
    %c0 = arith.constant 0 : index
    %c0_0 = arith.constant 0 : index
    %c0_1 = arith.constant 0 : index
    %0 = vector.load %arg1[%c0, %c0_0, %c0_1] : memref<1x256x128xbf16, #tpu.memory_space<vmem>>, vector<1x256x128xbf16>
    %1 = vector.shape_cast %0 : vector<1x256x128xbf16> to vector<256x128xbf16>
    %2 = arith.extf %1 : vector<256x128xbf16> to vector<256x128xf32>
    %c0_2 = arith.constant 0 : index
    %c0_3 = arith.constant 0 : index
    %3 = vector.load %arg2[%c0_2, %c0_3] : memref<1x128xf32, #tpu.memory_space<vmem>>, vector<1x128xf32>
    %4 = vector.broadcast %3 : vector<1x128xf32> to vector<256x128xf32>
    %5 = arith.mulf %2, %4 : vector<256x128xf32>
    %c0_4 = arith.constant 0 : index
    %c0_5 = arith.constant 0 : index
    %6 = vector.load %arg3[%c0_4, %c0_5] : memref<1x128xf32, #tpu.memory_space<vmem>>, vector<1x128xf32>
    %7 = vector.broadcast %6 : vector<1x128xf32> to vector<256x128xf32>
    %8 = arith.addf %5, %7 : vector<256x128xf32>
    %cst = arith.constant 0.000000e+00 : f32
    %9 = vector.broadcast %cst : f32 to vector<256x128xf32>
    %10 = arith.maximumf %8, %9 : vector<256x128xf32>
    %c0_6 = arith.constant 0 : index
    %c0_7 = arith.constant 0 : index
    %c0_8 = arith.constant 0 : index
    %11 = vector.load %arg4[%c0_6, %c0_7, %c0_8] : memref<1x256x128xf32, #tpu.memory_space<vmem>>, vector<1x256x128xf32>
    %12 = vector.shape_cast %11 : vector<1x256x128xf32> to vector<256x128xf32>
    %13 = vector.shape_cast %10 : vector<256x128xf32> to vector<1x256x128xf32>
    tpu.vector_store %arg4[%c0_6, %c0_7, %c0_8], %13 {strides = array<i32>} : memref<1x256x128xf32, #tpu.memory_space<vmem>>, vector<1x256x128xf32>,
    return
  }
  func.func @transform_0(%arg0: i32) -> (i32, i32, i32) {
    %c0_i32 = arith.constant 0 : i32
    %c0_i32_0 = arith.constant 0 : i32
    %c0_i32_1 = arith.constant 0 : i32
    return %arg0, %c0_i32, %c0_i32_0 : i32, i32, i32
  }
  func.func @transform_1(%arg0: i32) -> (i32, i32) {
    %c0_i32 = arith.constant 0 : i32
    %c0_i32_0 = arith.constant 0 : i32
    %c0_i32_1 = arith.constant 0 : i32
    return %c0_i32, %c0_i32_0 : i32, i32
  }
  func.func @transform_2(%arg0: i32) -> (i32, i32) {
    %c0_i32 = arith.constant 0 : i32
    %c0_i32_0 = arith.constant 0 : i32
    %c0_i32_1 = arith.constant 0 : i32
    return %c0_i32, %c0_i32_0 : i32, i32
  }
  func.func @transform_3(%arg0: i32) -> (i32, i32, i32) {
    %c0_i32 = arith.constant 0 : i32
    %c0_i32_0 = arith.constant 0 : i32
    %c0_i32_1 = arith.constant 0 : i32
    return %arg0, %c0_i32, %c0_i32_0 : i32, i32, i32
  }
}

</mosaic_0001>

<llo_original>
// kernel: unit_forward.3
$region0: #{unit_forward.3}
  #allocation0 [shape = 'u32[]', space=smem, size = 0x4, offset = 0x4, fixed_abs, tag = 'smem constant byte address 0x4 - core index']
  #allocation1 [shape = 'u32[144,128]{1,0:T(1,128)}', space=vmem, size = 0x12000, scoped, tag = 'internal scratch']
  %s0 = inlined_call_operand.vmem [shape: bf16[2,256,128], index: 0, kind: input, shape index: {}]
  %s1 = inlined_call_operand.vmem [shape: f32[1,128], index: 1, kind: input, shape index: {}]
  %s2 = inlined_call_operand.vmem [shape: f32[1,128], index: 2, kind: input, shape index: {}]
  %s3 = inlined_call_operand.vmem [shape: f32[2,256,128], index: 3, kind: output, shape index: {}]
  %s4 = sld [smem:[#allocation0]]
  $region45: #{unit_forward.3} parent=0
    _
  %s6 = ssub.s32 1, %s4
  %s7 = scalar_select 0, %s6, %s4
  loop: start=0, step=1, limit=4
  $region2: #{unit_forward.3} parent=0 // loop_pre_header
    _
  $region3: #{unit_forward.3} parent=0 // loop_header
    %s9 = sphi 0, %s13
    %p10 = scmp.ge.s32.totalorder %s9, 4
    %s19 = sphi 0, %s21
    %s22 = sphi 0, %s19
    %s23 = sphi 0, %s22
    %s39 = sphi 0, %s23
    %s43 = sphi 0, %s43
    %s45 = sphi 0, %s43
    %s46 = sphi 0, %s45
    %s60 = sphi 0, %s46
    %s64 = sphi 0, %s64
    %s66 = sphi 0, %s64
    %s67 = sphi 0, %s66
    %s81 = sphi 0, %s67
    %s87 = sphi 0, %s89
    %s90 = sphi 0, %s87
    %s91 = sphi 0, %s90
    %s107 = sphi 0, %s91
  $region4: #{unit_forward.3} parent=0 // loop_header_branch
    %12 = sbr.rel (%p10) target = $region8
  $region5: #{unit_forward.3} parent=0 // loop_body
    %s14 = ssub.s32 %s9, 1
    %s15 = ssub.s32 %s9, 2
    %s16 = sadd.s32 %s9, 1
    %s17 = ssub.s32 %s9, %s16
    %p18 = scmp.eq.s32.totalorder %s17, 0
    %s20 = sadd.s32 %s19, 1
    %s21 = scalar_select %p18, %s19, %s20
    %p24 = pneg %p18
    %p25 = scmp.eq.s32.totalorder %s9, 1
    %p26 = por %p24, %p25
    %p27 = scmp.ne.s32.totalorder %s19, %s22
    %p28 = scmp.eq.s32.totalorder %s9, 0
    %p29 = por %p27, %p28
    %p30 = scmp.ne.s32.totalorder %s19, %s22
    %p31 = scmp.eq.s32.totalorder %s14, 1
    %p32 = por %p30, %p31
    %p33 = scmp.ne.s32.totalorder %s22, %s23
    %p34 = scmp.eq.s32.totalorder %s14, 0
    %p35 = por %p33, %p34
    %p36 = scmp.ne.s32.totalorder %s22, %s23
    %p37 = scmp.eq.s32.totalorder %s15, 1
    %p38 = por %p36, %p37
    %p40 = scmp.ne.s32.totalorder %s23, %s39
    %p41 = scmp.eq.s32.totalorder %s15, 0
    %p42 = por %p40, %p41
    %s44 = sadd.s32 %s43, 1
    %p47 = scmp.eq.s32.totalorder %s9, 1
    %p48 = scmp.ne.s32.totalorder %s43, %s45
    %p49 = scmp.eq.s32.totalorder %s9, 0
    %p50 = por %p48, %p49
    %p51 = scmp.ne.s32.totalorder %s43, %s45
    %p52 = scmp.eq.s32.totalorder %s14, 1
    %p53 = por %p51, %p52
    %p54 = scmp.ne.s32.totalorder %s45, %s46
    %p55 = scmp.eq.s32.totalorder %s14, 0
    %p56 = por %p54, %p55
    %p57 = scmp.ne.s32.totalorder %s45, %s46
    %p58 = scmp.eq.s32.totalorder %s15, 1
    %p59 = por %p57, %p58
    %p61 = scmp.ne.s32.totalorder %s46, %s60
    %p62 = scmp.eq.s32.totalorder %s15, 0
    %p63 = por %p61, %p62
    %s65 = sadd.s32 %s64, 1
    %p68 = scmp.eq.s32.totalorder %s9, 1
    %p69 = scmp.ne.s32.totalorder %s64, %s66
    %p70 = scmp.eq.s32.totalorder %s9, 0
    %p71 = por %p69, %p70
    %p72 = scmp.ne.s32.totalorder %s64, %s66
    %p73 = scmp.eq.s32.totalorder %s14, 1
    %p74 = por %p72, %p73
    %p75 = scmp.ne.s32.totalorder %s66, %s67
    %p76 = scmp.eq.s32.totalorder %s14, 0
    %p77 = por %p75, %p76
    %p78 = scmp.ne.s32.totalorder %s66, %s67
    %p79 = scmp.eq.s32.totalorder %s15, 1
    %p80 = por %p78, %p79
    %p82 = scmp.ne.s32.totalorder %s67, %s81
    %p83 = scmp.eq.s32.totalorder %s15, 0
    %p84 = por %p82, %p83
    %s85 = ssub.s32 %s9, %s16
    %p86 = scmp.eq.s32.totalorder %s85, 0
    %s88 = sadd.s32 %s87, 1
    %s89 = scalar_select %p86, %s87, %s88
    %p92 = pneg %p86
    %p93 = scmp.eq.s32.totalorder %s9, 1
    %p94 = por %p92, %p93
    %p95 = scmp.ne.s32.totalorder %s87, %s90
    %p96 = scmp.eq.s32.totalorder %s9, 0
    %p97 = por %p95, %p96
    %p98 = scmp.ne.s32.totalorder %s87, %s90
    %p99 = scmp.eq.s32.totalorder %s14, 1
    %p100 = por %p98, %p99
    %p101 = scmp.ne.s32.totalorder %s90, %s91
    %p102 = scmp.eq.s32.totalorder %s14, 0
    %p103 = por %p101, %p102
    %p104 = scmp.ne.s32.totalorder %s90, %s91
    %p105 = scmp.eq.s32.totalorder %s15, 1
    %p106 = por %p104, %p105
    %p108 = scmp.ne.s32.totalorder %s91, %s107
    %p109 = scmp.eq.s32.totalorder %s15, 0
    %p110 = por %p108, %p109
    %p111 = scmp.le.s32.totalorder 1, %s9
    %p112 = scmp.lt.s32.totalorder %s9, 3
    %p113 = pnand %p111, %p112
    %p114 = pneg %p113
    // Predicated region
    $region9: #{unit_forward.3} parent=5 // pred_check
      _
    $region10: #{unit_forward.3} parent=5 // pred_check_branch
      %116 = sbr.rel (%p113) target = $region12
    $region11: #{unit_forward.3} parent=5 // pred_region
      %s117 = ssub.s32 %s9, 1
      // Predicated region
      $region13: #{unit_forward.3} parent=11 // pred_check
        %p118 = pneg %p56
      $region14: #{unit_forward.3} parent=11 // pred_check_branch
        %120 = sbr.rel (%p118) target = $region16
      $region15: #{unit_forward.3} parent=11 // pred_region
        _
      $region16: #{unit_forward.3} parent=11 // pred_fallthru
        _
      // Predicated region
      $region17: #{unit_forward.3} parent=11 // pred_check
        %p121 = pneg %p77
      $region18: #{unit_forward.3} parent=11 // pred_check_branch
        %123 = sbr.rel (%p121) target = $region20
      $region19: #{unit_forward.3} parent=11 // pred_region
        _
      $region20: #{unit_forward.3} parent=11 // pred_fallthru
        _
    $region12: #{unit_forward.3} parent=5 // pred_fallthru
      _
    %p124 = scmp.lt.s32.totalorder %s9, 2
    // Predicated region
    $region21: #{unit_forward.3} parent=5 // pred_check
      %p125 = pneg %p124
    $region22: #{unit_forward.3} parent=5 // pred_check_branch
      %127 = sbr.rel (%p125) target = $region24
    $region23: #{unit_forward.3} parent=5 // pred_region
      // Predicated region
      $region25: #{unit_forward.3} parent=23 // pred_check
        %p128 = pneg %p29
      $region26: #{unit_forward.3} parent=23 // pred_check_branch
        %130 = sbr.rel (%p128) target = $region28
      $region27: #{unit_forward.3} parent=23 // pred_region
        %p131 = scmp.lt.s32.totalorder %s9, 1
        %s132 = scalar_select %p131, %s9, 1
        %s133 = smul.addr %s132, 32
        %s134 = smul.addr %s133, 4
        %s135 = scalar_lea.vmem %s0, %s134
      $region28: #{unit_forward.3} parent=23 // pred_fallthru
        _
    $region24: #{unit_forward.3} parent=5 // pred_fallthru
      _
    %p136 = scmp.le.s32.totalorder 1, %s9
    %p137 = scmp.lt.s32.totalorder %s9, 3
    %p138 = pnand %p136, %p137
    %p139 = pneg %p138
    // Predicated region
    $region29: #{unit_forward.3} parent=5 // pred_check
      _
    $region30: #{unit_forward.3} parent=5 // pred_check_branch
      %141 = sbr.rel (%p138) target = $region32
    $region31: #{unit_forward.3} parent=5 // pred_region
      %s142 = ssub.s32 %s9, 1
      %p143 = scmp.lt.s32.totalorder %s14, 1
      %s144 = scalar_select %p143, %s14, 1
      %s145 = smul.addr %s144, 32
      %s146 = smul.addr %s145, 4
      %s147 = scalar_lea.vmem %s0, %s146
      %p148 = pneg %p35
      %p149 = pneg %p32
      %p150 = pneg %p56
      %p151 = pneg %p53
      %p152 = pneg %p77
      %p153 = pneg %p74
      %p154 = pneg %p103
      %p155 = pneg %p100
      %p156 = scmp.lt.s32.totalorder %s14, 1
      %s157 = scalar_select %p156, %s14, 1
      %s158 = smul.addr %s157, 32
      %s159 = smul.addr %s158, 8
      %s160 = scalar_lea.vmem %s3, %s159
      %p161 = scmp.lt.s32.totalorder %s14, 1
      %s162 = scalar_select %p161, %s14, 1
      %s163 = smul.addr %s162, 32
      %s164 = smul.addr %s163, 4
      %s165 = scalar_lea.vmem %s0, %s164
      %p166 = scmp.lt.s32.totalorder %s14, 1
      %s167 = scalar_select %p166, %s14, 1
      %s168 = smul.addr %s167, 32
      %s169 = smul.addr %s168, 8
      %s170 = scalar_lea.vmem %s3, %s169
      %v171 = vld [vmem:[%s165] sm:$0xf]
      %v172 = vld [vmem:[%s165 + $0x4] sm:$0xf]
      %v173 = vld [vmem:[%s165 + $0x8] sm:$0xf]
      %v174 = vld [vmem:[%s165 + $0xc] sm:$0xf]
      %v175 = vld [vmem:[%s165 + $0x10] sm:$0xf]
      %v176 = vld [vmem:[%s165 + $0x14] sm:$0xf]
      %v177 = vld [vmem:[%s165 + $0x18] sm:$0xf]
      %v178 = vld [vmem:[%s165 + $0x1c] sm:$0xf]
      %v179 = vld [vmem:[%s165 + $0x20] sm:$0xf]
      %v180 = vld [vmem:[%s165 + $0x24] sm:$0xf]
      %v181 = vld [vmem:[%s165 + $0x28] sm:$0xf]
      %v182 = vld [vmem:[%s165 + $0x2c] sm:$0xf]
      %v183 = vld [vmem:[%s165 + $0x30] sm:$0xf]
      %v184 = vld [vmem:[%s165 + $0x34] sm:$0xf]
      %v185 = vld [vmem:[%s165 + $0x38] sm:$0xf]
      %v186 = vld [vmem:[%s165 + $0x3c] sm:$0xf]
      %v187 = vld [vmem:[%s165 + $0x40] sm:$0xf]
      %v188 = vld [vmem:[%s165 + $0x44] sm:$0xf]
      %v189 = vld [vmem:[%s165 + $0x48] sm:$0xf]
      %v190 = vld [vmem:[%s165 + $0x4c] sm:$0xf]
      %v191 = vld [vmem:[%s165 + $0x50] sm:$0xf]
      %v192 = vld [vmem:[%s165 + $0x54] sm:$0xf]
      %v193 = vld [vmem:[%s165 + $0x58] sm:$0xf]
      %v194 = vld [vmem:[%s165 + $0x5c] sm:$0xf]
      %v195 = vld [vmem:[%s165 + $0x60] sm:$0xf]
      %v196 = vld [vmem:[%s165 + $0x64] sm:$0xf]
      %v197 = vld [vmem:[%s165 + $0x68] sm:$0xf]
      %v198 = vld [vmem:[%s165 + $0x6c] sm:$0xf]
      %v199 = vld [vmem:[%s165 + $0x70] sm:$0xf]
      %v200 = vld [vmem:[%s165 + $0x74] sm:$0xf]
      %v201 = vld [vmem:[%s165 + $0x78] sm:$0xf]
      %v202 = vld [vmem:[%s165 + $0x7c] sm:$0xf]
      %v203 = vunpack.c.l.bf16 %v171
      %v204 = vunpack.c.l.bf16 %v172
      %v205 = vunpack.c.l.bf16 %v173
      %v206 = vunpack.c.l.bf16 %v174
      %v207 = vunpack.c.l.bf16 %v175
      %v208 = vunpack.c.l.bf16 %v176
      %v209 = vunpack.c.l.bf16 %v177
      %v210 = vunpack.c.l.bf16 %v178
      %v211 = vunpack.c.l.bf16 %v179
      %v212 = vunpack.c.l.bf16 %v180
      %v213 = vunpack.c.l.bf16 %v181
      %v214 = vunpack.c.l.bf16 %v182
      %v215 = vunpack.c.l.bf16 %v183
      %v216 = vunpack.c.l.bf16 %v184
      %v217 = vunpack.c.l.bf16 %v185
      %v218 = vunpack.c.l.bf16 %v186
      %v219 = vunpack.c.l.bf16 %v187
      %v220 = vunpack.c.l.bf16 %v188
      %v221 = vunpack.c.l.bf16 %v189
      %v222 = vunpack.c.l.bf16 %v190
      %v223 = vunpack.c.l.bf16 %v191
      %v224 = vunpack.c.l.bf16 %v192
      %v225 = vunpack.c.l.bf16 %v193
      %v226 = vunpack.c.l.bf16 %v194
      %v227 = vunpack.c.l.bf16 %v195
      %v228 = vunpack.c.l.bf16 %v196
      %v229 = vunpack.c.l.bf16 %v197
      %v230 = vunpack.c.l.bf16 %v198
      %v231 = vunpack.c.l.bf16 %v199
      %v232 = vunpack.c.l.bf16 %v200
      %v233 = vunpack.c.l.bf16 %v201
      %v234 = vunpack.c.l.bf16 %v202
      %v235 = vld [vmem:[%s1] sm:$0x1]
      %v237 = vlaneseq
      %v238 = vshrl.u32 %v237, 7
      %v239 = vsub.s32 0, %v238
      %v240 = vrot.slane %v235, %v239
      %v242 = vmul.f32 %v203, %v240
      %v243 = vmul.f32 %v204, %v240
      %v244 = vmul.f32 %v205, %v240
      %v245 = vmul.f32 %v206, %v240
      %v246 = vmul.f32 %v207, %v240
      %v247 = vmul.f32 %v208, %v240
      %v248 = vmul.f32 %v209, %v240
      %v249 = vmul.f32 %v210, %v240
      %v250 = vmul.f32 %v211, %v240
      %v251 = vmul.f32 %v212, %v240
      %v252 = vmul.f32 %v213, %v240
      %v253 = vmul.f32 %v214, %v240
      %v254 = vmul.f32 %v215, %v240
      %v255 = vmul.f32 %v216, %v240
      %v256 = vmul.f32 %v217, %v240
      %v257 = vmul.f32 %v218, %v240
      %v258 = vmul.f32 %v219, %v240
      %v259 = vmul.f32 %v220, %v240
      %v260 = vmul.f32 %v221, %v240
      %v261 = vmul.f32 %v222, %v240
      %v262 = vmul.f32 %v223, %v240
      %v263 = vmul.f32 %v224, %v240
      %v264 = vmul.f32 %v225, %v240
      %v265 = vmul.f32 %v226, %v240
      %v266 = vmul.f32 %v227, %v240
      %v267 = vmul.f32 %v228, %v240
      %v268 = vmul.f32 %v229, %v240
      %v269 = vmul.f32 %v230, %v240
      %v270 = vmul.f32 %v231, %v240
      %v271 = vmul.f32 %v232, %v240
      %v272 = vmul.f32 %v233, %v240
      %v273 = vmul.f32 %v234, %v240
      %v274 = vld [vmem:[%s2] sm:$0x1]
      %v276 = vlaneseq
      %v277 = vshrl.u32 %v276, 7
      %v278 = vsub.s32 0, %v277
      %v279 = vrot.slane %v274, %v278
      %v281 = vadd.f32 %v242, %v279
      %v282 = vadd.f32 %v243, %v279
      %v283 = vadd.f32 %v244, %v279
      %v284 = vadd.f32 %v245, %v279
      %v285 = vadd.f32 %v246, %v279
      %v286 = vadd.f32 %v247, %v279
      %v287 = vadd.f32 %v248, %v279
      %v288 = vadd.f32 %v249, %v279
      %v289 = vadd.f32 %v250, %v279
      %v290 = vadd.f32 %v251, %v279
      %v291 = vadd.f32 %v252, %v279
      %v292 = vadd.f32 %v253, %v279
      %v293 = vadd.f32 %v254, %v279
      %v294 = vadd.f32 %v255, %v279
      %v295 = vadd.f32 %v256, %v279
      %v296 = vadd.f32 %v257, %v279
      %v297 = vadd.f32 %v258, %v279
      %v298 = vadd.f32 %v259, %v279
      %v299 = vadd.f32 %v260, %v279
      %v300 = vadd.f32 %v261, %v279
      %v301 = vadd.f32 %v262, %v279
      %v302 = vadd.f32 %v263, %v279
      %v303 = vadd.f32 %v264, %v279
      %v304 = vadd.f32 %v265, %v279
      %v305 = vadd.f32 %v266, %v279
      %v306 = vadd.f32 %v267, %v279
      %v307 = vadd.f32 %v268, %v279
      %v308 = vadd.f32 %v269, %v279
      %v309 = vadd.f32 %v270, %v279
      %v310 = vadd.f32 %v271, %v279
      %v311 = vadd.f32 %v272, %v279
      %v312 = vadd.f32 %v273, %v279
      %v313 = vmax.f32 %v281, 0.0
      %v314 = vmax.f32 %v282, 0.0
      %v315 = vmax.f32 %v283, 0.0
      %v316 = vmax.f32 %v284, 0.0
      %v317 = vmax.f32 %v285, 0.0
      %v318 = vmax.f32 %v286, 0.0
      %v319 = vmax.f32 %v287, 0.0
      %v320 = vmax.f32 %v288, 0.0
      %v321 = vmax.f32 %v289, 0.0
      %v322 = vmax.f32 %v290, 0.0
      %v323 = vmax.f32 %v291, 0.0
      %v324 = vmax.f32 %v292, 0.0
      %v325 = vmax.f32 %v293, 0.0
      %v326 = vmax.f32 %v294, 0.0
      %v327 = vmax.f32 %v295, 0.0
      %v328 = vmax.f32 %v296, 0.0
      %v329 = vmax.f32 %v297, 0.0
      %v330 = vmax.f32 %v298, 0.0
      %v331 = vmax.f32 %v299, 0.0
      %v332 = vmax.f32 %v300, 0.0
      %v333 = vmax.f32 %v301, 0.0
      %v334 = vmax.f32 %v302, 0.0
      %v335 = vmax.f32 %v303, 0.0
      %v336 = vmax.f32 %v304, 0.0
      %v337 = vmax.f32 %v305, 0.0
      %v338 = vmax.f32 %v306, 0.0
      %v339 = vmax.f32 %v307, 0.0
      %v340 = vmax.f32 %v308, 0.0
      %v341 = vmax.f32 %v309, 0.0
      %v342 = vmax.f32 %v310, 0.0
      %v343 = vmax.f32 %v311, 0.0
      %v344 = vmax.f32 %v312, 0.0
      %345 = vst [vmem:[%s170] sm:$0xff] %v313
      %346 = vst [vmem:[%s170 + $0x8] sm:$0xff] %v314
      %347 = vst [vmem:[%s170 + $0x10] sm:$0xff] %v315
      %348 = vst [vmem:[%s170 + $0x18] sm:$0xff] %v316
      %349 = vst [vmem:[%s170 + $0x20] sm:$0xff] %v317
      %350 = vst [vmem:[%s170 + $0x28] sm:$0xff] %v318
      %351 = vst [vmem:[%s170 + $0x30] sm:$0xff] %v319
      %352 = vst [vmem:[%s170 + $0x38] sm:$0xff] %v320
      %353 = vst [vmem:[%s170 + $0x40] sm:$0xff] %v321
      %354 = vst [vmem:[%s170 + $0x48] sm:$0xff] %v322
      %355 = vst [vmem:[%s170 + $0x50] sm:$0xff] %v323
      %356 = vst [vmem:[%s170 + $0x58] sm:$0xff] %v324
      %357 = vst [vmem:[%s170 + $0x60] sm:$0xff] %v325
      %358 = vst [vmem:[%s170 + $0x68] sm:$0xff] %v326
      %359 = vst [vmem:[%s170 + $0x70] sm:$0xff] %v327
      %360 = vst [vmem:[%s170 + $0x78] sm:$0xff] %v328
      %361 = vst [vmem:[%s170 + $0x80] sm:$0xff] %v329
      %362 = vst [vmem:[%s170 + $0x88] sm:$0xff] %v330
      %363 = vst [vmem:[%s170 + $0x90] sm:$0xff] %v331
      %364 = vst [vmem:[%s170 + $0x98] sm:$0xff] %v332
      %365 = vst [vmem:[%s170 + $0xa0] sm:$0xff] %v333
      %366 = vst [vmem:[%s170 + $0xa8] sm:$0xff] %v334
      %367 = vst [vmem:[%s170 + $0xb0] sm:$0xff] %v335
      %368 = vst [vmem:[%s170 + $0xb8] sm:$0xff] %v336
      %369 = vst [vmem:[%s170 + $0xc0] sm:$0xff] %v337
      %370 = vst [vmem:[%s170 + $0xc8] sm:$0xff] %v338
      %371 = vst [vmem:[%s170 + $0xd0] sm:$0xff] %v339
      %372 = vst [vmem:[%s170 + $0xd8] sm:$0xff] %v340
      %373 = vst [vmem:[%s170 + $0xe0] sm:$0xff] %v341
      %374 = vst [vmem:[%s170 + $0xe8] sm:$0xff] %v342
      %375 = vst [vmem:[%s170 + $0xf0] sm:$0xff] %v343
      %376 = vst [vmem:[%s170 + $0xf8] sm:$0xff] %v344
      %p377 = scmp.lt.s32.totalorder %s14, 1
      %s378 = scalar_select %p377, %s14, 1
      %s379 = smul.addr %s378, 32
      %s380 = smul.addr %s379, 8
      %s381 = scalar_lea.vmem %s3, %s380
      // Predicated region
      $region33: #{unit_forward.3} parent=31 // pred_check
        %p382 = pneg %p100
      $region34: #{unit_forward.3} parent=31 // pred_check_branch
        %384 = sbr.rel (%p382) target = $region36
      $region35: #{unit_forward.3} parent=31 // pred_region
        _
      $region36: #{unit_forward.3} parent=31 // pred_fallthru
        _
    $region32: #{unit_forward.3} parent=5 // pred_fallthru
      _
    %p385 = scmp.le.s32.totalorder 2, %s9
    // Predicated region
    $region37: #{unit_forward.3} parent=5 // pred_check
      %p386 = pneg %p385
    $region38: #{unit_forward.3} parent=5 // pred_check_branch
      %388 = sbr.rel (%p386) target = $region40
    $region39: #{unit_forward.3} parent=5 // pred_region
      %s389 = ssub.s32 %s9, 2
      // Predicated region
      $region41: #{unit_forward.3} parent=39 // pred_check
        %p390 = pneg %p106
      $region42: #{unit_forward.3} parent=39 // pred_check_branch
        %392 = sbr.rel (%p390) target = $region44
      $region43: #{unit_forward.3} parent=39 // pred_region
        %p393 = scmp.lt.s32.totalorder %s15, 1
        %s394 = scalar_select %p393, %s15, 1
        %s395 = smul.addr %s394, 32
        %s396 = smul.addr %s395, 8
        %s397 = scalar_lea.vmem %s3, %s396
      $region44: #{unit_forward.3} parent=39 // pred_fallthru
        _
    $region40: #{unit_forward.3} parent=5 // pred_fallthru
      _
  $region6: #{unit_forward.3} parent=0 // loop_footer
    %s13 = sadd.s32 1, %s9
  $region7: #{unit_forward.3} parent=0 // loop_footer_branch
    %8 = sbr.rel target = $region3
  $region8: #{unit_forward.3} parent=0 // loop_exit
    _

// kernel: unit_forward.2
$region0: #{unit_forward.2}
  #allocation0 [shape = 'u32[]', space=smem, size = 0x4, offset = 0x4, fixed_abs, tag = 'smem constant byte address 0x4 - core index']
  #allocation1 [shape = 'u32[144,128]{1,0:T(1,128)}', space=vmem, size = 0x12000, scoped, tag = 'internal scratch']
  %s0 = inlined_call_operand.vmem [shape: bf16[2,18,18,4], index: 0, kind: input, shape index: {}]
  %s1 = inlined_call_operand.vmem [shape: bf16[3,12,128], index: 1, kind: input, shape index: {}]
  %s2 = inlined_call_operand.vmem [shape: bf16[2,256,128], index: 2, kind: output, shape index: {0}]
  %s3 = inlined_call_operand.vmem [shape: f32[2,1,128], index: 3, kind: output, shape index: {1}]
  %s4 = inlined_call_operand.vmem [shape: f32[2,1,128], index: 4, kind: output, shape index: {2}]
  %5 = xla_tuple %s2, %s3, %s4
  %s6 = sld [smem:[#allocation0]]
  $region57: #{unit_forward.2} parent=0
    _
  %s8 = ssub.s32 1, %s6
  %s9 = scalar_select 0, %s8, %s6
  loop: start=0, step=1, limit=4
  $region2: #{unit_forward.2} parent=0 // loop_pre_header
    _
  $region3: #{unit_forward.2} parent=0 // loop_header
    %s11 = sphi 0, %s15
    %p12 = scmp.ge.s32.totalorder %s11, 4
    %s21 = sphi 0, %s23
    %s24 = sphi 0, %s21
    %s25 = sphi 0, %s24
    %s41 = sphi 0, %s25
    %s45 = sphi 0, %s45
    %s47 = sphi 0, %s45
    %s48 = sphi 0, %s47
    %s62 = sphi 0, %s48
    %s68 = sphi 0, %s70
    %s71 = sphi 0, %s68
    %s72 = sphi 0, %s71
    %s88 = sphi 0, %s72
    %s94 = sphi 0, %s96
    %s97 = sphi 0, %s94
    %s98 = sphi 0, %s97
    %s114 = sphi 0, %s98
    %s120 = sphi 0, %s122
    %s123 = sphi 0, %s120
    %s124 = sphi 0, %s123
    %s140 = sphi 0, %s124
  $region4: #{unit_forward.2} parent=0 // loop_header_branch
    %14 = sbr.rel (%p12) target = $region8
  $region5: #{unit_forward.2} parent=0 // loop_body
    %s16 = ssub.s32 %s11, 1
    %s17 = ssub.s32 %s11, 2
    %s18 = sadd.s32 %s11, 1
    %s19 = ssub.s32 %s11, %s18
    %p20 = scmp.eq.s32.totalorder %s19, 0
    %s22 = sadd.s32 %s21, 1
    %s23 = scalar_select %p20, %s21, %s22
    %p26 = pneg %p20
    %p27 = scmp.eq.s32.totalorder %s11, 1
    %p28 = por %p26, %p27
    %p29 = scmp.ne.s32.totalorder %s21, %s24
    %p30 = scmp.eq.s32.totalorder %s11, 0
    %p31 = por %p29, %p30
    %p32 = scmp.ne.s32.totalorder %s21, %s24
    %p33 = scmp.eq.s32.totalorder %s16, 1
    %p34 = por %p32, %p33
    %p35 = scmp.ne.s32.totalorder %s24, %s25
    %p36 = scmp.eq.s32.totalorder %s16, 0
    %p37 = por %p35, %p36
    %p38 = scmp.ne.s32.totalorder %s24, %s25
    %p39 = scmp.eq.s32.totalorder %s17, 1
    %p40 = por %p38, %p39
    %p42 = scmp.ne.s32.totalorder %s25, %s41
    %p43 = scmp.eq.s32.totalorder %s17, 0
    %p44 = por %p42, %p43
    %s46 = sadd.s32 %s45, 1
    %p49 = scmp.eq.s32.totalorder %s11, 1
    %p50 = scmp.ne.s32.totalorder %s45, %s47
    %p51 = scmp.eq.s32.totalorder %s11, 0
    %p52 = por %p50, %p51
    %p53 = scmp.ne.s32.totalorder %s45, %s47
    %p54 = scmp.eq.s32.totalorder %s16, 1
    %p55 = por %p53, %p54
    %p56 = scmp.ne.s32.totalorder %s47, %s48
    %p57 = scmp.eq.s32.totalorder %s16, 0
    %p58 = por %p56, %p57
    %p59 = scmp.ne.s32.totalorder %s47, %s48
    %p60 = scmp.eq.s32.totalorder %s17, 1
    %p61 = por %p59, %p60
    %p63 = scmp.ne.s32.totalorder %s48, %s62
    %p64 = scmp.eq.s32.totalorder %s17, 0
    %p65 = por %p63, %p64
    %s66 = ssub.s32 %s11, %s18
    %p67 = scmp.eq.s32.totalorder %s66, 0
    %s69 = sadd.s32 %s68, 1
    %s70 = scalar_select %p67, %s68, %s69
    %p73 = pneg %p67
    %p74 = scmp.eq.s32.totalorder %s11, 1
    %p75 = por %p73, %p74
    %p76 = scmp.ne.s32.totalorder %s68, %s71
    %p77 = scmp.eq.s32.totalorder %s11, 0
    %p78 = por %p76, %p77
    %p79 = scmp.ne.s32.totalorder %s68, %s71
    %p80 = scmp.eq.s32.totalorder %s16, 1
    %p81 = por %p79, %p80
    %p82 = scmp.ne.s32.totalorder %s71, %s72
    %p83 = scmp.eq.s32.totalorder %s16, 0
    %p84 = por %p82, %p83
    %p85 = scmp.ne.s32.totalorder %s71, %s72
    %p86 = scmp.eq.s32.totalorder %s17, 1
    %p87 = por %p85, %p86
    %p89 = scmp.ne.s32.totalorder %s72, %s88
    %p90 = scmp.eq.s32.totalorder %s17, 0
    %p91 = por %p89, %p90
    %s92 = ssub.s32 %s11, %s18
    %p93 = scmp.eq.s32.totalorder %s92, 0
    %s95 = sadd.s32 %s94, 1
    %s96 = scalar_select %p93, %s94, %s95
    %p99 = pneg %p93
    %p100 = scmp.eq.s32.totalorder %s11, 1
    %p101 = por %p99, %p100
    %p102 = scmp.ne.s32.totalorder %s94, %s97
    %p103 = scmp.eq.s32.totalorder %s11, 0
    %p104 = por %p102, %p103
    %p105 = scmp.ne.s32.totalorder %s94, %s97
    %p106 = scmp.eq.s32.totalorder %s16, 1
    %p107 = por %p105, %p106
    %p108 = scmp.ne.s32.totalorder %s97, %s98
    %p109 = scmp.eq.s32.totalorder %s16, 0
    %p110 = por %p108, %p109
    %p111 = scmp.ne.s32.totalorder %s97, %s98
    %p112 = scmp.eq.s32.totalorder %s17, 1
    %p113 = por %p111, %p112
    %p115 = scmp.ne.s32.totalorder %s98, %s114
    %p116 = scmp.eq.s32.totalorder %s17, 0
    %p117 = por %p115, %p116
    %s118 = ssub.s32 %s11, %s18
    %p119 = scmp.eq.s32.totalorder %s118, 0
    %s121 = sadd.s32 %s120, 1
    %s122 = scalar_select %p119, %s120, %s121
    %p125 = pneg %p119
    %p126 = scmp.eq.s32.totalorder %s11, 1
    %p127 = por %p125, %p126
    %p128 = scmp.ne.s32.totalorder %s120, %s123
    %p129 = scmp.eq.s32.totalorder %s11, 0
    %p130 = por %p128, %p129
    %p131 = scmp.ne.s32.totalorder %s120, %s123
    %p132 = scmp.eq.s32.totalorder %s16, 1
    %p133 = por %p131, %p132
    %p134 = scmp.ne.s32.totalorder %s123, %s124
    %p135 = scmp.eq.s32.totalorder %s16, 0
    %p136 = por %p134, %p135
    %p137 = scmp.ne.s32.totalorder %s123, %s124
    %p138 = scmp.eq.s32.totalorder %s17, 1
    %p139 = por %p137, %p138
    %p141 = scmp.ne.s32.totalorder %s124, %s140
    %p142 = scmp.eq.s32.totalorder %s17, 0
    %p143 = por %p141, %p142
    %p144 = scmp.le.s32.totalorder 1, %s11
    %p145 = scmp.lt.s32.totalorder %s11, 3
    %p146 = pnand %p144, %p145
    %p147 = pneg %p146
    // Predicated region
    $region9: #{unit_forward.2} parent=5 // pred_check
      _
    $region10: #{unit_forward.2} parent=5 // pred_check_branch
      %149 = sbr.rel (%p146) target = $region12
    $region11: #{unit_forward.2} parent=5 // pred_region
      %s150 = ssub.s32 %s11, 1
      // Predicated region
      $region13: #{unit_forward.2} parent=11 // pred_check
        %p151 = pneg %p58
      $region14: #{unit_forward.2} parent=11 // pred_check_branch
        %153 = sbr.rel (%p151) target = $region16
      $region15: #{unit_forward.2} parent=11 // pred_region
        _
      $region16: #{unit_forward.2} parent=11 // pred_fallthru
        _
    $region12: #{unit_forward.2} parent=5 // pred_fallthru
      _
    %p154 = scmp.lt.s32.totalorder %s11, 2
    // Predicated region
    $region17: #{unit_forward.2} parent=5 // pred_check
      %p155 = pneg %p154
    $region18: #{unit_forward.2} parent=5 // pred_check_branch
      %157 = sbr.rel (%p155) target = $region20
    $region19: #{unit_forward.2} parent=5 // pred_region
      // Predicated region
      $region21: #{unit_forward.2} parent=19 // pred_check
        %p158 = pneg %p31
      $region22: #{unit_forward.2} parent=19 // pred_check_branch
        %160 = sbr.rel (%p158) target = $region24
      $region23: #{unit_forward.2} parent=19 // pred_region
        %p161 = scmp.lt.s32.totalorder %s11, 1
        %s162 = scalar_select %p161, %s11, 1
        %s163 = smul.addr %s162, 54
        %s164 = smul.addr %s163, 4
        %s165 = scalar_lea.vmem %s0, %s164
      $region24: #{unit_forward.2} parent=19 // pred_fallthru
        _
    $region20: #{unit_forward.2} parent=5 // pred_fallthru
      _
    %p166 = scmp.le.s32.totalorder 1, %s11
    %p167 = scmp.lt.s32.totalorder %s11, 3
    %p168 = pnand %p166, %p167
    %p169 = pneg %p168
    // Predicated region
    $region25: #{unit_forward.2} parent=5 // pred_check
      _
    $region26: #{unit_forward.2} parent=5 // pred_check_branch
      %171 = sbr.rel (%p168) target = $region28
    $region27: #{unit_forward.2} parent=5 // pred_region
      %s172 = ssub.s32 %s11, 1
      %p173 = scmp.lt.s32.totalorder %s16, 1
      %s174 = scalar_select %p173, %s16, 1
      %s175 = smul.addr %s174, 54
      %s176 = smul.addr %s175, 4
      %s177 = scalar_lea.vmem %s0, %s176
      %p178 = pneg %p37
      %p179 = pneg %p34
      %p180 = pneg %p58
      %p181 = pneg %p55
      %p182 = pneg %p84
      %p183 = pneg %p81
      %p184 = scmp.lt.s32.totalorder %s16, 1
      %s185 = scalar_select %p184, %s16, 1
      %s186 = smul.addr %s185, 32
      %s187 = smul.addr %s186, 4
      %s188 = scalar_lea.vmem %s2, %s187
      %p189 = pneg %p110
      %p190 = pneg %p107
      %p191 = scmp.lt.s32.totalorder %s16, 1
      %s192 = scalar_select %p191, %s16, 1
      %s193 = scalar_lea.vmem %s3, %s192
      %p194 = pneg %p136
      %p195 = pneg %p133
      %p196 = scmp.lt.s32.totalorder %s16, 1
      %s197 = scalar_select %p196, %s16, 1
      %s198 = scalar_lea.vmem %s4, %s197
      %p199 = scmp.lt.s32.totalorder %s16, 1
      %s200 = scalar_select %p199, %s16, 1
      %s201 = smul.addr %s200, 54
      %s202 = smul.addr %s201, 4
      %s203 = scalar_lea.vmem %s0, %s202
      %p204 = scmp.lt.s32.totalorder %s16, 1
      %s205 = scalar_select %p204, %s16, 1
      %s206 = smul.addr %s205, 32
      %s207 = smul.addr %s206, 4
      %s208 = scalar_lea.vmem %s2, %s207
      %p209 = scmp.lt.s32.totalorder %s16, 1
      %s210 = scalar_select %p209, %s16, 1
      %s211 = scalar_lea.vmem %s3, %s210
      %p212 = scmp.lt.s32.totalorder %s16, 1
      %s213 = scalar_select %p212, %s16, 1
      %s214 = scalar_lea.vmem %s4, %s213
      %v216 = vld [vmem:[%s203] sm:$0xf]
      %v217 = vld [vmem:[%s203 + $0x4] sm:$0xf]
      %v218 = vld [vmem:[%s203 + $0x8] sm:$0x1]
      %v219 = vld [vmem:[%s203 + $0xc] sm:$0xf]
      %v220 = vld [vmem:[%s203 + $0x10] sm:$0xf]
      %v221 = vld [vmem:[%s203 + $0x14] sm:$0x1]
      %v222 = vld [vmem:[%s203 + $0x18] sm:$0xf]
      %v223 = vld [vmem:[%s203 + $0x1c] sm:$0xf]
      %v224 = vld [vmem:[%s203 + $0x20] sm:$0x1]
      %v225 = vld [vmem:[%s203 + $0x24] sm:$0xf]
      %v226 = vld [vmem:[%s203 + $0x28] sm:$0xf]
      %v227 = vld [vmem:[%s203 + $0x2c] sm:$0x1]
      %v228 = vld [vmem:[%s203 + $0x30] sm:$0xf]
      %v229 = vld [vmem:[%s203 + $0x34] sm:$0xf]
      %v230 = vld [vmem:[%s203 + $0x38] sm:$0x1]
      %v231 = vld [vmem:[%s203 + $0x3c] sm:$0xf]
      %v232 = vld [vmem:[%s203 + $0x40] sm:$0xf]
      %v233 = vld [vmem:[%s203 + $0x44] sm:$0x1]
      %v234 = vld [vmem:[%s203 + $0x48] sm:$0xf]
      %v235 = vld [vmem:[%s203 + $0x4c] sm:$0xf]
      %v236 = vld [vmem:[%s203 + $0x50] sm:$0x1]
      %v237 = vld [vmem:[%s203 + $0x54] sm:$0xf]
      %v238 = vld [vmem:[%s203 + $0x58] sm:$0xf]
      %v239 = vld [vmem:[%s203 + $0x5c] sm:$0x1]
      %v240 = vld [vmem:[%s203 + $0x60] sm:$0xf]
      %v241 = vld [vmem:[%s203 + $0x64] sm:$0xf]
      %v242 = vld [vmem:[%s203 + $0x68] sm:$0x1]
      %v243 = vld [vmem:[%s203 + $0x6c] sm:$0xf]
      %v244 = vld [vmem:[%s203 + $0x70] sm:$0xf]
      %v245 = vld [vmem:[%s203 + $0x74] sm:$0x1]
      %v246 = vld [vmem:[%s203 + $0x78] sm:$0xf]
      %v247 = vld [vmem:[%s203 + $0x7c] sm:$0xf]
      %v248 = vld [vmem:[%s203 + $0x80] sm:$0x1]
      %v249 = vld [vmem:[%s203 + $0x84] sm:$0xf]
      %v250 = vld [vmem:[%s203 + $0x88] sm:$0xf]
      %v251 = vld [vmem:[%s203 + $0x8c] sm:$0x1]
      %v252 = vld [vmem:[%s203 + $0x90] sm:$0xf]
      %v253 = vld [vmem:[%s203 + $0x94] sm:$0xf]
      %v254 = vld [vmem:[%s203 + $0x98] sm:$0x1]
      %v255 = vld [vmem:[%s203 + $0x9c] sm:$0xf]
      %v256 = vld [vmem:[%s203 + $0xa0] sm:$0xf]
      %v257 = vld [vmem:[%s203 + $0xa4] sm:$0x1]
      %v258 = vld [vmem:[%s203 + $0xa8] sm:$0xf]
      %v259 = vld [vmem:[%s203 + $0xac] sm:$0xf]
      %v260 = vld [vmem:[%s203 + $0xb0] sm:$0x1]
      %v261 = vld [vmem:[%s203 + $0xb4] sm:$0xf]
      %v262 = vld [vmem:[%s203 + $0xb8] sm:$0xf]
      %v263 = vld [vmem:[%s203 + $0xbc] sm:$0x1]
      %v264 = vld [vmem:[%s203 + $0xc0] sm:$0xf]
      %v265 = vld [vmem:[%s203 + $0xc4] sm:$0xf]
      %v266 = vld [vmem:[%s203 + $0xc8] sm:$0x1]
      %v267 = vld [vmem:[%s203 + $0xcc] sm:$0xf]
      %v268 = vld [vmem:[%s203 + $0xd0] sm:$0xf]
      %v269 = vld [vmem:[%s203 + $0xd4] sm:$0x1]
      %v306 = vunpack.c.l.b16 %v216
      %v307 = vunpack.c.l.b16 %v217
      %v308 = vunpack.c.l.b16 %v219
      %v309 = vunpack.c.l.b16 %v220
      %v310 = vunpack.c.l.b16 %v222
      %v311 = vunpack.c.l.b16 %v223
      %v312 = vunpack.c.l.b16 %v225
      %v313 = vunpack.c.l.b16 %v226
      %v314 = vunpack.c.l.b16 %v228
      %v315 = vunpack.c.l.b16 %v229
      %v316 = vunpack.c.l.b16 %v231
      %v317 = vunpack.c.l.b16 %v232
      %v318 = vunpack.c.l.b16 %v234
      %v319 = vunpack.c.l.b16 %v235
      %v320 = vunpack.c.l.b16 %v237
      %v321 = vunpack.c.l.b16 %v238
      %v322 = vunpack.c.l.b16 %v240
      %v323 = vunpack.c.l.b16 %v241
      %v324 = vunpack.c.l.b16 %v243
      %v325 = vunpack.c.l.b16 %v244
      %v326 = vunpack.c.l.b16 %v246
      %v327 = vunpack.c.l.b16 %v247
      %v328 = vunpack.c.l.b16 %v249
      %v329 = vunpack.c.l.b16 %v250
      %v330 = vunpack.c.l.b16 %v252
      %v331 = vunpack.c.l.b16 %v253
      %v332 = vunpack.c.l.b16 %v255
      %v333 = vunpack.c.l.b16 %v256
      %v334 = vunpack.c.l.b16 %v258
      %v335 = vunpack.c.l.b16 %v259
      %v336 = vunpack.c.l.b16 %v261
      %v337 = vunpack.c.l.b16 %v262
      %v338 = vunpack.c.l.b16 %v264
      %v339 = vunpack.c.l.b16 %v265
      %v340 = vunpack.c.l.b16 %v267
      %v341 = vunpack.c.l.b16 %v268
      %v342 = vpack.c.b16 %v307, %v306
      %v343 = vpack.c.b16 %v309, %v308
      %v344 = vpack.c.b16 %v311, %v310
      %v345 = vpack.c.b16 %v313, %v312
      %v346 = vpack.c.b16 %v315, %v314
      %v347 = vpack.c.b16 %v317, %v316
      %v348 = vpack.c.b16 %v319, %v318
      %v349 = vpack.c.b16 %v321, %v320
      %v350 = vpack.c.b16 %v323, %v322
      %v351 = vpack.c.b16 %v325, %v324
      %v352 = vpack.c.b16 %v327, %v326
      %v353 = vpack.c.b16 %v329, %v328
      %v354 = vpack.c.b16 %v331, %v330
      %v355 = vpack.c.b16 %v333, %v332
      %v356 = vpack.c.b16 %v335, %v334
      %v357 = vpack.c.b16 %v337, %v336
      %v358 = vpack.c.b16 %v339, %v338
      %v359 = vpack.c.b16 %v341, %v340
      %v378 = vunpack.c.l.b16 %v218
      %v379 = vunpack.c.l.b16 %v221
      %v380 = vunpack.c.l.b16 %v224
      %v381 = vunpack.c.l.b16 %v227
      %v382 = vunpack.c.l.b16 %v230
      %v383 = vunpack.c.l.b16 %v233
      %v384 = vunpack.c.l.b16 %v236
      %v385 = vunpack.c.l.b16 %v239
      %v386 = vunpack.c.l.b16 %v242
      %v387 = vunpack.c.l.b16 %v245
      %v388 = vunpack.c.l.b16 %v248
      %v389 = vunpack.c.l.b16 %v251
      %v390 = vunpack.c.l.b16 %v254
      %v391 = vunpack.c.l.b16 %v257
      %v392 = vunpack.c.l.b16 %v260
      %v393 = vunpack.c.l.b16 %v263
      %v394 = vunpack.c.l.b16 %v266
      %v395 = vunpack.c.l.b16 %v269
      %v396 = vpack.c.b16 %v378, %v378
      %v397 = vpack.c.b16 %v379, %v379
      %v398 = vpack.c.b16 %v380, %v380
      %v399 = vpack.c.b16 %v381, %v381
      %v400 = vpack.c.b16 %v382, %v382
      %v401 = vpack.c.b16 %v383, %v383
      %v402 = vpack.c.b16 %v384, %v384
      %v403 = vpack.c.b16 %v385, %v385
      %v404 = vpack.c.b16 %v386, %v386
      %v405 = vpack.c.b16 %v387, %v387
      %v406 = vpack.c.b16 %v388, %v388
      %v407 = vpack.c.b16 %v389, %v389
      %v408 = vpack.c.b16 %v390, %v390
      %v409 = vpack.c.b16 %v391, %v391
      %v410 = vpack.c.b16 %v392, %v392
      %v411 = vpack.c.b16 %v393, %v393
      %v412 = vpack.c.b16 %v394, %v394
      %v413 = vpack.c.b16 %v395, %v395
      %vm414 = vsmask.f32 7424
      %v416 = vshrl.u32 %v342, 16
      %v418 = vshll.u32 %v342, 16
      %v420 = vrot.slane %v418, 1
      %v421 = vor.u32 %v416, %v420
      %v423 = vshll.u32 %v396, 16
      %v425 = vrot.slane %v423, 1
      %v426 = vsel %vm414, %v421, %v425
      %v428 = vshrl.u32 %v343, 16
      %v430 = vshll.u32 %v343, 16
      %v432 = vrot.slane %v430, 1
      %v433 = vor.u32 %v428, %v432
      %v435 = vshll.u32 %v397, 16
      %v437 = vrot.slane %v435, 1
      %v438 = vsel %vm414, %v433, %v437
      %v440 = vshrl.u32 %v344, 16
      %v442 = vshll.u32 %v344, 16
      %v444 = vrot.slane %v442, 1
      %v445 = vor.u32 %v440, %v444
      %v447 = vshll.u32 %v398, 16
      %v449 = vrot.slane %v447, 1
      %v450 = vsel %vm414, %v445, %v449
      %v452 = vshrl.u32 %v345, 16
      %v454 = vshll.u32 %v345, 16
      %v456 = vrot.slane %v454, 1
      %v457 = vor.u32 %v452, %v456
      %v459 = vshll.u32 %v399, 16
      %v461 = vrot.slane %v459, 1
      %v462 = vsel %vm414, %v457, %v461
      %v464 = vshrl.u32 %v346, 16
      %v466 = vshll.u32 %v346, 16
      %v468 = vrot.slane %v466, 1
      %v469 = vor.u32 %v464, %v468
      %v471 = vshll.u32 %v400, 16
      %v473 = vrot.slane %v471, 1
      %v474 = vsel %vm414, %v469, %v473
      %v476 = vshrl.u32 %v347, 16
      %v478 = vshll.u32 %v347, 16
      %v480 = vrot.slane %v478, 1
      %v481 = vor.u32 %v476, %v480
      %v483 = vshll.u32 %v401, 16
      %v485 = vrot.slane %v483, 1
      %v486 = vsel %vm414, %v481, %v485
      %v488 = vshrl.u32 %v348, 16
      %v490 = vshll.u32 %v348, 16
      %v492 = vrot.slane %v490, 1
      %v493 = vor.u32 %v488, %v492
      %v495 = vshll.u32 %v402, 16
      %v497 = vrot.slane %v495, 1
      %v498 = vsel %vm414, %v493, %v497
      %v500 = vshrl.u32 %v349, 16
      %v502 = vshll.u32 %v349, 16
      %v504 = vrot.slane %v502, 1
      %v505 = vor.u32 %v500, %v504
      %v507 = vshll.u32 %v403, 16
      %v509 = vrot.slane %v507, 1
      %v510 = vsel %vm414, %v505, %v509
      %v512 = vshrl.u32 %v350, 16
      %v514 = vshll.u32 %v350, 16
      %v516 = vrot.slane %v514, 1
      %v517 = vor.u32 %v512, %v516
      %v519 = vshll.u32 %v404, 16
      %v521 = vrot.slane %v519, 1
      %v522 = vsel %vm414, %v517, %v521
      %v524 = vshrl.u32 %v351, 16
      %v526 = vshll.u32 %v351, 16
      %v528 = vrot.slane %v526, 1
      %v529 = vor.u32 %v524, %v528
      %v531 = vshll.u32 %v405, 16
      %v533 = vrot.slane %v531, 1
      %v534 = vsel %vm414, %v529, %v533
      %v536 = vshrl.u32 %v352, 16
      %v538 = vshll.u32 %v352, 16
      %v540 = vrot.slane %v538, 1
      %v541 = vor.u32 %v536, %v540
      %v543 = vshll.u32 %v406, 16
      %v545 = vrot.slane %v543, 1
      %v546 = vsel %vm414, %v541, %v545
      %v548 = vshrl.u32 %v353, 16
      %v550 = vshll.u32 %v353, 16
      %v552 = vrot.slane %v550, 1
      %v553 = vor.u32 %v548, %v552
      %v555 = vshll.u32 %v407, 16
      %v557 = vrot.slane %v555, 1
      %v558 = vsel %vm414, %v553, %v557
      %v560 = vshrl.u32 %v354, 16
      %v562 = vshll.u32 %v354, 16
      %v564 = vrot.slane %v562, 1
      %v565 = vor.u32 %v560, %v564
      %v567 = vshll.u32 %v408, 16
      %v569 = vrot.slane %v567, 1
      %v570 = vsel %vm414, %v565, %v569
      %v572 = vshrl.u32 %v355, 16
      %v574 = vshll.u32 %v355, 16
      %v576 = vrot.slane %v574, 1
      %v577 = vor.u32 %v572, %v576
      %v579 = vshll.u32 %v409, 16
      %v581 = vrot.slane %v579, 1
      %v582 = vsel %vm414, %v577, %v581
      %v584 = vshrl.u32 %v356, 16
      %v586 = vshll.u32 %v356, 16
      %v588 = vrot.slane %v586, 1
      %v589 = vor.u32 %v584, %v588
      %v591 = vshll.u32 %v410, 16
      %v593 = vrot.slane %v591, 1
      %v594 = vsel %vm414, %v589, %v593
      %v596 = vshrl.u32 %v357, 16
      %v598 = vshll.u32 %v357, 16
      %v600 = vrot.slane %v598, 1
      %v601 = vor.u32 %v596, %v600
      %v603 = vshll.u32 %v411, 16
      %v605 = vrot.slane %v603, 1
      %v606 = vsel %vm414, %v601, %v605
      %v608 = vshrl.u32 %v358, 16
      %v610 = vshll.u32 %v358, 16
      %v612 = vrot.slane %v610, 1
      %v613 = vor.u32 %v608, %v612
      %v615 = vshll.u32 %v412, 16
      %v617 = vrot.slane %v615, 1
      %v618 = vsel %vm414, %v613, %v617
      %v620 = vshrl.u32 %v359, 16
      %v622 = vshll.u32 %v359, 16
      %v624 = vrot.slane %v622, 1
      %v625 = vor.u32 %v620, %v624
      %v627 = vshll.u32 %v413, 16
      %v629 = vrot.slane %v627, 1
      %v630 = vsel %vm414, %v625, %v629
      %631 = vrot.lane.b32.xlu0 %v426, 4
      %v632 = vpop.permute.xlu0 %631
      %633 = vrot.lane.b32.xlu0 %v438, 4
      %v634 = vpop.permute.xlu0 %633
      %635 = vrot.lane.b32.xlu0 %v450, 4
      %v636 = vpop.permute.xlu0 %635
      %637 = vrot.lane.b32.xlu0 %v462, 4
      %v638 = vpop.permute.xlu0 %637
      %639 = vrot.lane.b32.xlu0 %v474, 4
      %v640 = vpop.permute.xlu0 %639
      %641 = vrot.lane.b32.xlu0 %v486, 4
      %v642 = vpop.permute.xlu0 %641
      %643 = vrot.lane.b32.xlu0 %v498, 4
      %v644 = vpop.permute.xlu0 %643
      %645 = vrot.lane.b32.xlu0 %v510, 4
      %v646 = vpop.permute.xlu0 %645
      %647 = vrot.lane.b32.xlu0 %v522, 4
      %v648 = vpop.permute.xlu0 %647
      %649 = vrot.lane.b32.xlu0 %v534, 4
      %v650 = vpop.permute.xlu0 %649
      %651 = vrot.lane.b32.xlu0 %v546, 4
      %v652 = vpop.permute.xlu0 %651
      %653 = vrot.lane.b32.xlu0 %v558, 4
      %v654 = vpop.permute.xlu0 %653
      %655 = vrot.lane.b32.xlu0 %v570, 4
      %v656 = vpop.permute.xlu0 %655
      %657 = vrot.lane.b32.xlu0 %v582, 4
      %v658 = vpop.permute.xlu0 %657
      %659 = vrot.lane.b32.xlu0 %v594, 4
      %v660 = vpop.permute.xlu0 %659
      %661 = vrot.lane.b32.xlu0 %v606, 4
      %v662 = vpop.permute.xlu0 %661
      %663 = vrot.lane.b32.xlu0 %v618, 4
      %v664 = vpop.permute.xlu0 %663
      %665 = vrot.lane.b32.xlu0 %v630, 4
      %v666 = vpop.permute.xlu0 %665
      %vm667 = vcmask 1046528
      %v668 = vrot.slane %v342, 1
      %v669 = vrot.slane %v396, 1
      %v670 = vsel %vm667, %v668, %v669
      %v671 = vrot.slane %v343, 1
      %v672 = vrot.slane %v397, 1
      %v673 = vsel %vm667, %v671, %v672
      %v674 = vrot.slane %v344, 1
      %v675 = vrot.slane %v398, 1
      %v676 = vsel %vm667, %v674, %v675
      %v677 = vrot.slane %v345, 1
      %v678 = vrot.slane %v399, 1
      %v679 = vsel %vm667, %v677, %v678
      %v680 = vrot.slane %v346, 1
      %v681 = vrot.slane %v400, 1
      %v682 = vsel %vm667, %v680, %v681
      %v683 = vrot.slane %v347, 1
      %v684 = vrot.slane %v401, 1
      %v685 = vsel %vm667, %v683, %v684
      %v686 = vrot.slane %v348, 1
      %v687 = vrot.slane %v402, 1
      %v688 = vsel %vm667, %v686, %v687
      %v689 = vrot.slane %v349, 1
      %v690 = vrot.slane %v403, 1
      %v691 = vsel %vm667, %v689, %v690
      %v692 = vrot.slane %v350, 1
      %v693 = vrot.slane %v404, 1
      %v694 = vsel %vm667, %v692, %v693
      %v695 = vrot.slane %v351, 1
      %v696 = vrot.slane %v405, 1
      %v697 = vsel %vm667, %v695, %v696
      %v698 = vrot.slane %v352, 1
      %v699 = vrot.slane %v406, 1
      %v700 = vsel %vm667, %v698, %v699
      %v701 = vrot.slane %v353, 1
      %v702 = vrot.slane %v407, 1
      %v703 = vsel %vm667, %v701, %v702
      %v704 = vrot.slane %v354, 1
      %v705 = vrot.slane %v408, 1
      %v706 = vsel %vm667, %v704, %v705
      %v707 = vrot.slane %v355, 1
      %v708 = vrot.slane %v409, 1
      %v709 = vsel %vm667, %v707, %v708
      %v710 = vrot.slane %v356, 1
      %v711 = vrot.slane %v410, 1
      %v712 = vsel %vm667, %v710, %v711
      %v713 = vrot.slane %v357, 1
      %v714 = vrot.slane %v411, 1
      %v715 = vsel %vm667, %v713, %v714
      %v716 = vrot.slane %v358, 1
      %v717 = vrot.slane %v412, 1
      %v718 = vsel %vm667, %v716, %v717
      %v719 = vrot.slane %v359, 1
      %v720 = vrot.slane %v413, 1
      %v721 = vsel %vm667, %v719, %v720
      %722 = vrot.lane.b32.xlu0 %v670, 8
      %v723 = vpop.permute.xlu0 %722
      %724 = vrot.lane.b32.xlu0 %v673, 8
      %v725 = vpop.permute.xlu0 %724
      %726 = vrot.lane.b32.xlu0 %v676, 8
      %v727 = vpop.permute.xlu0 %726
      %728 = vrot.lane.b32.xlu0 %v679, 8
      %v729 = vpop.permute.xlu0 %728
      %730 = vrot.lane.b32.xlu0 %v682, 8
      %v731 = vpop.permute.xlu0 %730
      %732 = vrot.lane.b32.xlu0 %v685, 8
      %v733 = vpop.permute.xlu0 %732
      %734 = vrot.lane.b32.xlu0 %v688, 8
      %v735 = vpop.permute.xlu0 %734
      %736 = vrot.lane.b32.xlu0 %v691, 8
      %v737 = vpop.permute.xlu0 %736
      %738 = vrot.lane.b32.xlu0 %v694, 8
      %v739 = vpop.permute.xlu0 %738
      %740 = vrot.lane.b32.xlu0 %v697, 8
      %v741 = vpop.permute.xlu0 %740
      %742 = vrot.lane.b32.xlu0 %v700, 8
      %v743 = vpop.permute.xlu0 %742
      %744 = vrot.lane.b32.xlu0 %v703, 8
      %v745 = vpop.permute.xlu0 %744
      %746 = vrot.lane.b32.xlu0 %v706, 8
      %v747 = vpop.permute.xlu0 %746
      %748 = vrot.lane.b32.xlu0 %v709, 8
      %v749 = vpop.permute.xlu0 %748
      %750 = vrot.lane.b32.xlu0 %v712, 8
      %v751 = vpop.permute.xlu0 %750
      %752 = vrot.lane.b32.xlu0 %v715, 8
      %v753 = vpop.permute.xlu0 %752
      %754 = vrot.lane.b32.xlu0 %v718, 8
      %v755 = vpop.permute.xlu0 %754
      %756 = vrot.lane.b32.xlu0 %v721, 8
      %v757 = vpop.permute.xlu0 %756
      %vm758 = vcmask 31744
      %v760 = vsel %vm758, %v342, %v632
      %v762 = vsel %vm758, %v343, %v634
      %v764 = vsel %vm758, %v344, %v636
      %v766 = vsel %vm758, %v345, %v638
      %v768 = vsel %vm758, %v346, %v640
      %v770 = vsel %vm758, %v347, %v642
      %v772 = vsel %vm758, %v348, %v644
      %v774 = vsel %vm758, %v349, %v646
      %v776 = vsel %vm758, %v350, %v648
      %v778 = vsel %vm758, %v351, %v650
      %v780 = vsel %vm758, %v352, %v652
      %v782 = vsel %vm758, %v353, %v654
      %v784 = vsel %vm758, %v354, %v656
      %v786 = vsel %vm758, %v355, %v658
      %v788 = vsel %vm758, %v356, %v660
      %v790 = vsel %vm758, %v357, %v662
      %v792 = vsel %vm758, %v358, %v664
      %v794 = vsel %vm758, %v359, %v666
      %vm795 = vcmask 64512
      %v797 = vsel %vm795, %v760, %v723
      %v799 = vsel %vm795, %v762, %v725
      %v801 = vsel %vm795, %v764, %v727
      %v803 = vsel %vm795, %v766, %v729
      %v805 = vsel %vm795, %v768, %v731
      %v807 = vsel %vm795, %v770, %v733
      %v809 = vsel %vm795, %v772, %v735
      %v811 = vsel %vm795, %v774, %v737
      %v813 = vsel %vm795, %v776, %v739
      %v815 = vsel %vm795, %v778, %v741
      %v817 = vsel %vm795, %v780, %v743
      %v819 = vsel %vm795, %v782, %v745
      %v821 = vsel %vm795, %v784, %v747
      %v823 = vsel %vm795, %v786, %v749
      %v825 = vsel %vm795, %v788, %v751
      %v827 = vsel %vm795, %v790, %v753
      %v829 = vsel %vm795, %v792, %v755
      %v831 = vsel %vm795, %v794, %v757
      %v832 = vld [vmem:[%s1] sm:$0xf]
      %v833 = vld [vmem:[%s1 + $0x4] sm:$0x3]
      %s834 = scalar_lea.vmem %s1, 8
      %v835 = vld [vmem:[%s834] sm:$0xf]
      %v836 = vld [vmem:[%s834 + $0x4] sm:$0x3]
      %v839 = vunpack.c.l.b16 %v835
      %v840 = vunpack.c.l.b16 %v836
      %v841 = vpack.c.b16 %v840, %v839
      %vm842 = vcmask 97280
      %v843 = vsel %vm842, %v799, 0
      %v845 = vsel %vm842, %v801, 0
      %v847 = vsel %vm842, %v803, 0
      %v849 = vsel %vm842, %v805, 0
      %v851 = vsel %vm842, %v807, 0
      %v853 = vsel %vm842, %v809, 0
      %v855 = vsel %vm842, %v811, 0
      %v857 = vsel %vm842, %v813, 0
      %v859 = vsel %vm842, %v815, 0
      %v861 = vsel %vm842, %v817, 0
      %v863 = vsel %vm842, %v819, 0
      %v865 = vsel %vm842, %v821, 0
      %v867 = vsel %vm842, %v823, 0
      %v869 = vsel %vm842, %v825, 0
      %v871 = vsel %vm842, %v827, 0
      %v873 = vsel %vm842, %v829, 0
      %vm875 = vcmask 1045504
      %v877 = vsel %vm875, %v841, 0
      %879 = vmatprep.subr.bf16.mxu0 0
      %880 = vmatpush1.bf16.msra.mxu0 %v877
      %881 = vmatprep.subr.bf16.mxu0 0
      %882 = vmatpush1.bf16.msra.mxu0 0
      %883 = vmatprep.subr.bf16.mxu0 0
      %884 = vmatpush1.bf16.msra.mxu0 0
      %885 = vmatprep.subr.bf16.mxu0 0
      %886 = vmatpush1.bf16.msra.mxu0 0
      %887 = vmatprep.subr.bf16.mxu0 0
      %888 = vmatpush1.bf16.msra.mxu0 0
      %889 = vmatprep.subr.bf16.mxu0 0
      %890 = vmatpush1.bf16.msra.mxu0 0
      %891 = vmatprep.subr.bf16.mxu0 0
      %892 = vmatpush1.bf16.msra.mxu0 0
      %893 = vmatprep.subr.bf16.mxu0 0
      %894 = vmatpush1.bf16.msra.mxu0 0
      %895 = vmatprep.subr.bf16.mxu0 0
      %896 = vmatpush1.bf16.msra.mxu0 0
      %897 = vmatprep.subr.bf16.mxu0 0
      %898 = vmatpush1.bf16.msra.mxu0 0
      %899 = vmatprep.subr.bf16.mxu0 0
      %900 = vmatpush1.bf16.msra.mxu0 0
      %901 = vmatprep.subr.bf16.mxu0 0
      %902 = vmatpush1.bf16.msra.mxu0 0
      %903 = vmatprep.subr.bf16.mxu0 0
      %904 = vmatpush1.bf16.msra.mxu0 0
      %905 = vmatprep.subr.bf16.mxu0 0
      %906 = vmatpush1.bf16.msra.mxu0 0
      %907 = vmatprep.subr.bf16.mxu0 0
      %908 = vmatpush1.bf16.msra.mxu0 0
      %909 = vmatprep.subr.bf16.mxu0 0
      %910 = vmatpush1.bf16.msra.mxu0 0
      %911 = vmatprep.mubr.bf16.mxu0 0
      %912 = vmatmul.mubr.bf16.gmra.mrb[0].mxu0 %v843
      %v913 = vpop.f32.mrb[0].mxu0
      %v914 = vadd.f32 0.0, %v913
      %v915 = vpop.f32.mrb[0].mxu0
      %v916 = vpop.f32.mrb[0].mxu0
      %v917 = vadd.f32 0.0, %v916
      %v918 = vpop.f32.mrb[0].mxu0
      %919 = vmatprep.mubr.bf16.mxu0 0
      %920 = vmatmul.mubr.bf16.gmra.mrb[0].mxu0 %v845
      %v921 = vpop.f32.mrb[0].mxu0
      %v922 = vadd.f32 0.0, %v921
      %v923 = vpop.f32.mrb[0].mxu0
      %v924 = vpop.f32.mrb[0].mxu0
      %v925 = vadd.f32 0.0, %v924
      %v926 = vpop.f32.mrb[0].mxu0
      %927 = vmatprep.mubr.bf16.mxu0 0
      %928 = vmatmul.mubr.bf16.gmra.mrb[0].mxu0 %v847
      %v929 = vpop.f32.mrb[0].mxu0
      %v930 = vadd.f32 0.0, %v929
      %v931 = vpop.f32.mrb[0].mxu0
      %v932 = vpop.f32.mrb[0].mxu0
      %v933 = vadd.f32 0.0, %v932
      %v934 = vpop.f32.mrb[0].mxu0
      %935 = vmatprep.mubr.bf16.mxu0 0
      %936 = vmatmul.mubr.bf16.gmra.mrb[0].mxu0 %v849
      %v937 = vpop.f32.mrb[0].mxu0
      %v938 = vadd.f32 0.0, %v937
      %v939 = vpop.f32.mrb[0].mxu0
      %v940 = vpop.f32.mrb[0].mxu0
      %v941 = vadd.f32 0.0, %v940
      %v942 = vpop.f32.mrb[0].mxu0
      %943 = vmatprep.mubr.bf16.mxu0 0
      %944 = vmatmul.mubr.bf16.gmra.mrb[0].mxu0 %v851
      %v945 = vpop.f32.mrb[0].mxu0
      %v946 = vadd.f32 0.0, %v945
      %v947 = vpop.f32.mrb[0].mxu0
      %v948 = vpop.f32.mrb[0].mxu0
      %v949 = vadd.f32 0.0, %v948
      %v950 = vpop.f32.mrb[0].mxu0
      %951 = vmatprep.mubr.bf16.mxu0 0
      %952 = vmatmul.mubr.bf16.gmra.mrb[0].mxu0 %v853
      %v953 = vpop.f32.mrb[0].mxu0
      %v954 = vadd.f32 0.0, %v953
      %v955 = vpop.f32.mrb[0].mxu0
      %v956 = vpop.f32.mrb[0].mxu0
      %v957 = vadd.f32 0.0, %v956
      %v958 = vpop.f32.mrb[0].mxu0
      %959 = vmatprep.mubr.bf16.mxu0 0
      %960 = vmatmul.mubr.bf16.gmra.mrb[0].mxu0 %v855
      %v961 = vpop.f32.mrb[0].mxu0
      %v962 = vadd.f32 0.0, %v961
      %v963 = vpop.f32.mrb[0].mxu0
      %v964 = vpop.f32.mrb[0].mxu0
      %v965 = vadd.f32 0.0, %v964
      %v966 = vpop.f32.mrb[0].mxu0
      %967 = vmatprep.mubr.bf16.mxu0 0
      %968 = vmatmul.mubr.bf16.gmra.mrb[0].mxu0 %v857
      %v969 = vpop.f32.mrb[0].mxu0
      %v970 = vadd.f32 0.0, %v969
      %v971 = vpop.f32.mrb[0].mxu0
      %v972 = vpop.f32.mrb[0].mxu0
      %v973 = vadd.f32 0.0, %v972
      %v974 = vpop.f32.mrb[0].mxu0
      %975 = vmatprep.mubr.bf16.mxu0 0
      %976 = vmatmul.mubr.bf16.gmra.mrb[0].mxu0 %v859
      %v977 = vpop.f32.mrb[0].mxu0
      %v978 = vadd.f32 0.0, %v977
      %v979 = vpop.f32.mrb[0].mxu0
      %v980 = vpop.f32.mrb[0].mxu0
      %v981 = vadd.f32 0.0, %v980
      %v982 = vpop.f32.mrb[0].mxu0
      %983 = vmatprep.mubr.bf16.mxu0 0
      %984 = vmatmul.mubr.bf16.gmra.mrb[0].mxu0 %v861
      %v985 = vpop.f32.mrb[0].mxu0
      %v986 = vadd.f32 0.0, %v985
      %v987 = vpop.f32.mrb[0].mxu0
      %v988 = vpop.f32.mrb[0].mxu0
      %v989 = vadd.f32 0.0, %v988
      %v990 = vpop.f32.mrb[0].mxu0
      %991 = vmatprep.mubr.bf16.mxu0 0
      %992 = vmatmul.mubr.bf16.gmra.mrb[0].mxu0 %v863
      %v993 = vpop.f32.mrb[0].mxu0
      %v994 = vadd.f32 0.0, %v993
      %v995 = vpop.f32.mrb[0].mxu0
      %v996 = vpop.f32.mrb[0].mxu0
      %v997 = vadd.f32 0.0, %v996
      %v998 = vpop.f32.mrb[0].mxu0
      %999 = vmatprep.mubr.bf16.mxu0 0
      %1000 = vmatmul.mubr.bf16.gmra.mrb[0].mxu0 %v865
      %v1001 = vpop.f32.mrb[0].mxu0
      %v1002 = vadd.f32 0.0, %v1001
      %v1003 = vpop.f32.mrb[0].mxu0
      %v1004 = vpop.f32.mrb[0].mxu0
      %v1005 = vadd.f32 0.0, %v1004
      %v1006 = vpop.f32.mrb[0].mxu0
      %1007 = vmatprep.mubr.bf16.mxu0 0
      %1008 = vmatmul.mubr.bf16.gmra.mrb[0].mxu0 %v867
      %v1009 = vpop.f32.mrb[0].mxu0
      %v1010 = vadd.f32 0.0, %v1009
      %v1011 = vpop.f32.mrb[0].mxu0
      %v1012 = vpop.f32.mrb[0].mxu0
      %v1013 = vadd.f32 0.0, %v1012
      %v1014 = vpop.f32.mrb[0].mxu0
      %1015 = vmatprep.mubr.bf16.mxu0 0
      %1016 = vmatmul.mubr.bf16.gmra.mrb[0].mxu0 %v869
      %v1017 = vpop.f32.mrb[0].mxu0
      %v1018 = vadd.f32 0.0, %v1017
      %v1019 = vpop.f32.mrb[0].mxu0
      %v1020 = vpop.f32.mrb[0].mxu0
      %v1021 = vadd.f32 0.0, %v1020
      %v1022 = vpop.f32.mrb[0].mxu0
      %1023 = vmatprep.mubr.bf16.mxu0 0
      %1024 = vmatmul.mubr.bf16.gmra.mrb[0].mxu0 %v871
      %v1025 = vpop.f32.mrb[0].mxu0
      %v1026 = vadd.f32 0.0, %v1025
      %v1027 = vpop.f32.mrb[0].mxu0
      %v1028 = vpop.f32.mrb[0].mxu0
      %v1029 = vadd.f32 0.0, %v1028
      %v1030 = vpop.f32.mrb[0].mxu0
      %1031 = vmatprep.mubr.bf16.mxu0 0
      %1032 = vmatmul.mubr.bf16.gmra.mrb[0].mxu0 %v873
      %v1033 = vpop.f32.mrb[0].mxu0
      %v1034 = vadd.f32 0.0, %v1033
      %v1035 = vpop.f32.mrb[0].mxu0
      %v1036 = vpop.f32.mrb[0].mxu0
      %v1037 = vadd.f32 0.0, %v1036
      %v1038 = vpop.f32.mrb[0].mxu0
      %1039 = vdwg.mxu0
      %v1042 = vunpack.c.l.b16 %v832
      %v1043 = vunpack.c.l.b16 %v833
      %v1044 = vpack.c.b16 %v1043, %v1042
      %v1045 = vsel %vm842, %v797, 0
      %v1048 = vsel %vm875, %v1044, 0
      %1050 = vmatprep.subr.bf16.mxu0 0
      %1051 = vmatpush1.bf16.msra.mxu0 %v1048
      %1052 = vmatprep.subr.bf16.mxu0 0
      %1053 = vmatpush1.bf16.msra.mxu0 0
      %1054 = vmatprep.subr.bf16.mxu0 0
      %1055 = vmatpush1.bf16.msra.mxu0 0
      %1056 = vmatprep.subr.bf16.mxu0 0
      %1057 = vmatpush1.bf16.msra.mxu0 0
      %1058 = vmatprep.subr.bf16.mxu0 0
      %1059 = vmatpush1.bf16.msra.mxu0 0
      %1060 = vmatprep.subr.bf16.mxu0 0
      %1061 = vmatpush1.bf16.msra.mxu0 0
      %1062 = vmatprep.subr.bf16.mxu0 0
      %1063 = vmatpush1.bf16.msra.mxu0 0
      %1064 = vmatprep.subr.bf16.mxu0 0
      %1065 = vmatpush1.bf16.msra.mxu0 0
      %1066 = vmatprep.subr.bf16.mxu0 0
      %1067 = vmatpush1.bf16.msra.mxu0 0
      %1068 = vmatprep.subr.bf16.mxu0 0
      %1069 = vmatpush1.bf16.msra.mxu0 0
      %1070 = vmatprep.subr.bf16.mxu0 0
      %1071 = vmatpush1.bf16.msra.mxu0 0
      %1072 = vmatprep.subr.bf16.mxu0 0
      %1073 = vmatpush1.bf16.msra.mxu0 0
      %1074 = vmatprep.subr.bf16.mxu0 0
      %1075 = vmatpush1.bf16.msra.mxu0 0
      %1076 = vmatprep.subr.bf16.mxu0 0
      %1077 = vmatpush1.bf16.msra.mxu0 0
      %1078 = vmatprep.subr.bf16.mxu0 0
      %1079 = vmatpush1.bf16.msra.mxu0 0
      %1080 = vmatprep.subr.bf16.mxu0 0
      %1081 = vmatpush1.bf16.msra.mxu0 0
      %1082 = vmatprep.mubr.bf16.mxu0 0
      %1083 = vmatmul.mubr.bf16.gmra.mrb[0].mxu0 %v1045
      %v1084 = vpop.f32.mrb[0].mxu0
      %v1085 = vadd.f32 %v914, %v1084
      %v1086 = vpop.f32.mrb[0].mxu0
      %v1087 = vpop.f32.mrb[0].mxu0
      %v1088 = vadd.f32 %v917, %v1087
      %v1089 = vpop.f32.mrb[0].mxu0
      %1090 = vmatprep.mubr.bf16.mxu0 0
      %1091 = vmatmul.mubr.bf16.gmra.mrb[0].mxu0 %v843
      %v1092 = vpop.f32.mrb[0].mxu0
      %v1093 = vadd.f32 %v922, %v1092
      %v1094 = vpop.f32.mrb[0].mxu0
      %v1095 = vpop.f32.mrb[0].mxu0
      %v1096 = vadd.f32 %v925, %v1095
      %v1097 = vpop.f32.mrb[0].mxu0
      %1098 = vmatprep.mubr.bf16.mxu0 0
      %1099 = vmatmul.mubr.bf16.gmra.mrb[0].mxu0 %v845
      %v1100 = vpop.f32.mrb[0].mxu0
      %v1101 = vadd.f32 %v930, %v1100
      %v1102 = vpop.f32.mrb[0].mxu0
      %v1103 = vpop.f32.mrb[0].mxu0
      %v1104 = vadd.f32 %v933, %v1103
      %v1105 = vpop.f32.mrb[0].mxu0
      %1106 = vmatprep.mubr.bf16.mxu0 0
      %1107 = vmatmul.mubr.bf16.gmra.mrb[0].mxu0 %v847
      %v1108 = vpop.f32.mrb[0].mxu0
      %v1109 = vadd.f32 %v938, %v1108
      %v1110 = vpop.f32.mrb[0].mxu0
      %v1111 = vpop.f32.mrb[0].mxu0
      %v1112 = vadd.f32 %v941, %v1111
      %v1113 = vpop.f32.mrb[0].mxu0
      %1114 = vmatprep.mubr.bf16.mxu0 0
      %1115 = vmatmul.mubr.bf16.gmra.mrb[0].mxu0 %v849
      %v1116 = vpop.f32.mrb[0].mxu0
      %v1117 = vadd.f32 %v946, %v1116
      %v1118 = vpop.f32.mrb[0].mxu0
      %v1119 = vpop.f32.mrb[0].mxu0
      %v1120 = vadd.f32 %v949, %v1119
      %v1121 = vpop.f32.mrb[0].mxu0
      %1122 = vmatprep.mubr.bf16.mxu0 0
      %1123 = vmatmul.mubr.bf16.gmra.mrb[0].mxu0 %v851
      %v1124 = vpop.f32.mrb[0].mxu0
      %v1125 = vadd.f32 %v954, %v1124
      %v1126 = vpop.f32.mrb[0].mxu0
      %v1127 = vpop.f32.mrb[0].mxu0
      %v1128 = vadd.f32 %v957, %v1127
      %v1129 = vpop.f32.mrb[0].mxu0
      %1130 = vmatprep.mubr.bf16.mxu0 0
      %1131 = vmatmul.mubr.bf16.gmra.mrb[0].mxu0 %v853
      %v1132 = vpop.f32.mrb[0].mxu0
      %v1133 = vadd.f32 %v962, %v1132
      %v1134 = vpop.f32.mrb[0].mxu0
      %v1135 = vpop.f32.mrb[0].mxu0
      %v1136 = vadd.f32 %v965, %v1135
      %v1137 = vpop.f32.mrb[0].mxu0
      %1138 = vmatprep.mubr.bf16.mxu0 0
      %1139 = vmatmul.mubr.bf16.gmra.mrb[0].mxu0 %v855
      %v1140 = vpop.f32.mrb[0].mxu0
      %v1141 = vadd.f32 %v970, %v1140
      %v1142 = vpop.f32.mrb[0].mxu0
      %v1143 = vpop.f32.mrb[0].mxu0
      %v1144 = vadd.f32 %v973, %v1143
      %v1145 = vpop.f32.mrb[0].mxu0
      %1146 = vmatprep.mubr.bf16.mxu0 0
      %1147 = vmatmul.mubr.bf16.gmra.mrb[0].mxu0 %v857
      %v1148 = vpop.f32.mrb[0].mxu0
      %v1149 = vadd.f32 %v978, %v1148
      %v1150 = vpop.f32.mrb[0].mxu0
      %v1151 = vpop.f32.mrb[0].mxu0
      %v1152 = vadd.f32 %v981, %v1151
      %v1153 = vpop.f32.mrb[0].mxu0
      %1154 = vmatprep.mubr.bf16.mxu0 0
      %1155 = vmatmul.mubr.bf16.gmra.mrb[0].mxu0 %v859
      %v1156 = vpop.f32.mrb[0].mxu0
      %v1157 = vadd.f32 %v986, %v1156
      %v1158 = vpop.f32.mrb[0].mxu0
      %v1159 = vpop.f32.mrb[0].mxu0
      %v1160 = vadd.f32 %v989, %v1159
      %v1161 = vpop.f32.mrb[0].mxu0
      %1162 = vmatprep.mubr.bf16.mxu0 0
      %1163 = vmatmul.mubr.bf16.gmra.mrb[0].mxu0 %v861
      %v1164 = vpop.f32.mrb[0].mxu0
      %v1165 = vadd.f32 %v994, %v1164
      %v1166 = vpop.f32.mrb[0].mxu0
      %v1167 = vpop.f32.mrb[0].mxu0
      %v1168 = vadd.f32 %v997, %v1167
      %v1169 = vpop.f32.mrb[0].mxu0
      %1170 = vmatprep.mubr.bf16.mxu0 0
      %1171 = vmatmul.mubr.bf16.gmra.mrb[0].mxu0 %v863
      %v1172 = vpop.f32.mrb[0].mxu0
      %v1173 = vadd.f32 %v1002, %v1172
      %v1174 = vpop.f32.mrb[0].mxu0
      %v1175 = vpop.f32.mrb[0].mxu0
      %v1176 = vadd.f32 %v1005, %v1175
      %v1177 = vpop.f32.mrb[0].mxu0
      %1178 = vmatprep.mubr.bf16.mxu0 0
      %1179 = vmatmul.mubr.bf16.gmra.mrb[0].mxu0 %v865
      %v1180 = vpop.f32.mrb[0].mxu0
      %v1181 = vadd.f32 %v1010, %v1180
      %v1182 = vpop.f32.mrb[0].mxu0
      %v1183 = vpop.f32.mrb[0].mxu0
      %v1184 = vadd.f32 %v1013, %v1183
      %v1185 = vpop.f32.mrb[0].mxu0
      %1186 = vmatprep.mubr.bf16.mxu0 0
      %1187 = vmatmul.mubr.bf16.gmra.mrb[0].mxu0 %v867
      %v1188 = vpop.f32.mrb[0].mxu0
      %v1189 = vadd.f32 %v1018, %v1188
      %v1190 = vpop.f32.mrb[0].mxu0
      %v1191 = vpop.f32.mrb[0].mxu0
      %v1192 = vadd.f32 %v1021, %v1191
      %v1193 = vpop.f32.mrb[0].mxu0
      %1194 = vmatprep.mubr.bf16.mxu0 0
      %1195 = vmatmul.mubr.bf16.gmra.mrb[0].mxu0 %v869
      %v1196 = vpop.f32.mrb[0].mxu0
      %v1197 = vadd.f32 %v1026, %v1196
      %v1198 = vpop.f32.mrb[0].mxu0
      %v1199 = vpop.f32.mrb[0].mxu0
      %v1200 = vadd.f32 %v1029, %v1199
      %v1201 = vpop.f32.mrb[0].mxu0
      %1202 = vmatprep.mubr.bf16.mxu0 0
      %1203 = vmatmul.mubr.bf16.gmra.mrb[0].mxu0 %v871
      %v1204 = vpop.f32.mrb[0].mxu0
      %v1205 = vadd.f32 %v1034, %v1204
      %v1206 = vpop.f32.mrb[0].mxu0
      %v1207 = vpop.f32.mrb[0].mxu0
      %v1208 = vadd.f32 %v1037, %v1207
      %v1209 = vpop.f32.mrb[0].mxu0
      %1210 = vdwg.mxu0
      %s1211 = scalar_lea.vmem %s1, 16
      %v1212 = vld [vmem:[%s1211] sm:$0xf]
      %v1213 = vld [vmem:[%s1211 + $0x4] sm:$0x3]
      %v1216 = vunpack.c.l.b16 %v1212
      %v1217 = vunpack.c.l.b16 %v1213
      %v1218 = vpack.c.b16 %v1217, %v1216
      %v1219 = vsel %vm842, %v831, 0
      %v1222 = vsel %vm875, %v1218, 0
      %1224 = vmatprep.subr.bf16.mxu0 0
      %1225 = vmatpush1.bf16.msra.mxu0 %v1222
      %1226 = vmatprep.subr.bf16.mxu0 0
      %1227 = vmatpush1.bf16.msra.mxu0 0
      %1228 = vmatprep.subr.bf16.mxu0 0
      %1229 = vmatpush1.bf16.msra.mxu0 0
      %1230 = vmatprep.subr.bf16.mxu0 0
      %1231 = vmatpush1.bf16.msra.mxu0 0
      %1232 = vmatprep.subr.bf16.mxu0 0
      %1233 = vmatpush1.bf16.msra.mxu0 0
      %1234 = vmatprep.subr.bf16.mxu0 0
      %1235 = vmatpush1.bf16.msra.mxu0 0
      %1236 = vmatprep.subr.bf16.mxu0 0
      %1237 = vmatpush1.bf16.msra.mxu0 0
      %1238 = vmatprep.subr.bf16.mxu0 0
      %1239 = vmatpush1.bf16.msra.mxu0 0
      %1240 = vmatprep.subr.bf16.mxu0 0
      %1241 = vmatpush1.bf16.msra.mxu0 0
      %1242 = vmatprep.subr.bf16.mxu0 0
      %1243 = vmatpush1.bf16.msra.mxu0 0
      %1244 = vmatprep.subr.bf16.mxu0 0
      %1245 = vmatpush1.bf16.msra.mxu0 0
      %1246 = vmatprep.subr.bf16.mxu0 0
      %1247 = vmatpush1.bf16.msra.mxu0 0
      %1248 = vmatprep.subr.bf16.mxu0 0
      %1249 = vmatpush1.bf16.msra.mxu0 0
      %1250 = vmatprep.subr.bf16.mxu0 0
      %1251 = vmatpush1.bf16.msra.mxu0 0
      %1252 = vmatprep.subr.bf16.mxu0 0
      %1253 = vmatpush1.bf16.msra.mxu0 0
      %1254 = vmatprep.subr.bf16.mxu0 0
      %1255 = vmatpush1.bf16.msra.mxu0 0
      %1256 = vmatprep.mubr.bf16.mxu0 0
      %1257 = vmatmul.mubr.bf16.gmra.mrb[0].mxu0 %v845
      %v1258 = vpop.f32.mrb[0].mxu0
      %v1259 = vadd.f32 0.0, %v1258
      %v1260 = vpop.f32.mrb[0].mxu0
      %v1261 = vpop.f32.mrb[0].mxu0
      %v1262 = vadd.f32 0.0, %v1261
      %v1263 = vpop.f32.mrb[0].mxu0
      %1264 = vmatprep.mubr.bf16.mxu0 0
      %1265 = vmatmul.mubr.bf16.gmra.mrb[0].mxu0 %v847
      %v1266 = vpop.f32.mrb[0].mxu0
      %v1267 = vadd.f32 0.0, %v1266
      %v1268 = vpop.f32.mrb[0].mxu0
      %v1269 = vpop.f32.mrb[0].mxu0
      %v1270 = vadd.f32 0.0, %v1269
      %v1271 = vpop.f32.mrb[0].mxu0
      %1272 = vmatprep.mubr.bf16.mxu0 0
      %1273 = vmatmul.mubr.bf16.gmra.mrb[0].mxu0 %v849
      %v1274 = vpop.f32.mrb[0].mxu0
      %v1275 = vadd.f32 0.0, %v1274
      %v1276 = vpop.f32.mrb[0].mxu0
      %v1277 = vpop.f32.mrb[0].mxu0
      %v1278 = vadd.f32 0.0, %v1277
      %v1279 = vpop.f32.mrb[0].mxu0
      %1280 = vmatprep.mubr.bf16.mxu0 0
      %1281 = vmatmul.mubr.bf16.gmra.mrb[0].mxu0 %v851
      %v1282 = vpop.f32.mrb[0].mxu0
      %v1283 = vadd.f32 0.0, %v1282
      %v1284 = vpop.f32.mrb[0].mxu0
      %v1285 = vpop.f32.mrb[0].mxu0
      %v1286 = vadd.f32 0.0, %v1285
      %v1287 = vpop.f32.mrb[0].mxu0
      %1288 = vmatprep.mubr.bf16.mxu0 0
      %1289 = vmatmul.mubr.bf16.gmra.mrb[0].mxu0 %v853
      %v1290 = vpop.f32.mrb[0].mxu0
      %v1291 = vadd.f32 0.0, %v1290
      %v1292 = vpop.f32.mrb[0].mxu0
      %v1293 = vpop.f32.mrb[0].mxu0
      %v1294 = vadd.f32 0.0, %v1293
      %v1295 = vpop.f32.mrb[0].mxu0
      %1296 = vmatprep.mubr.bf16.mxu0 0
      %1297 = vmatmul.mubr.bf16.gmra.mrb[0].mxu0 %v855
      %v1298 = vpop.f32.mrb[0].mxu0
      %v1299 = vadd.f32 0.0, %v1298
      %v1300 = vpop.f32.mrb[0].mxu0
      %v1301 = vpop.f32.mrb[0].mxu0
      %v1302 = vadd.f32 0.0, %v1301
      %v1303 = vpop.f32.mrb[0].mxu0
      %1304 = vmatprep.mubr.bf16.mxu0 0
      %1305 = vmatmul.mubr.bf16.gmra.mrb[0].mxu0 %v857
      %v1306 = vpop.f32.mrb[0].mxu0
      %v1307 = vadd.f32 0.0, %v1306
      %v1308 = vpop.f32.mrb[0].mxu0
      %v1309 = vpop.f32.mrb[0].mxu0
      %v1310 = vadd.f32 0.0, %v1309
      %v1311 = vpop.f32.mrb[0].mxu0
      %1312 = vmatprep.mubr.bf16.mxu0 0
      %1313 = vmatmul.mubr.bf16.gmra.mrb[0].mxu0 %v859
      %v1314 = vpop.f32.mrb[0].mxu0
      %v1315 = vadd.f32 0.0, %v1314
      %v1316 = vpop.f32.mrb[0].mxu0
      %v1317 = vpop.f32.mrb[0].mxu0
      %v1318 = vadd.f32 0.0, %v1317
      %v1319 = vpop.f32.mrb[0].mxu0
      %1320 = vmatprep.mubr.bf16.mxu0 0
      %1321 = vmatmul.mubr.bf16.gmra.mrb[0].mxu0 %v861
      %v1322 = vpop.f32.mrb[0].mxu0
      %v1323 = vadd.f32 0.0, %v1322
      %v1324 = vpop.f32.mrb[0].mxu0
      %v1325 = vpop.f32.mrb[0].mxu0
      %v1326 = vadd.f32 0.0, %v1325
      %v1327 = vpop.f32.mrb[0].mxu0
      %1328 = vmatprep.mubr.bf16.mxu0 0
      %1329 = vmatmul.mubr.bf16.gmra.mrb[0].mxu0 %v863
      %v1330 = vpop.f32.mrb[0].mxu0
      %v1331 = vadd.f32 0.0, %v1330
      %v1332 = vpop.f32.mrb[0].mxu0
      %v1333 = vpop.f32.mrb[0].mxu0
      %v1334 = vadd.f32 0.0, %v1333
      %v1335 = vpop.f32.mrb[0].mxu0
      %1336 = vmatprep.mubr.bf16.mxu0 0
      %1337 = vmatmul.mubr.bf16.gmra.mrb[0].mxu0 %v865
      %v1338 = vpop.f32.mrb[0].mxu0
      %v1339 = vadd.f32 0.0, %v1338
      %v1340 = vpop.f32.mrb[0].mxu0
      %v1341 = vpop.f32.mrb[0].mxu0
      %v1342 = vadd.f32 0.0, %v1341
      %v1343 = vpop.f32.mrb[0].mxu0
      %1344 = vmatprep.mubr.bf16.mxu0 0
      %1345 = vmatmul.mubr.bf16.gmra.mrb[0].mxu0 %v867
      %v1346 = vpop.f32.mrb[0].mxu0
      %v1347 = vadd.f32 0.0, %v1346
      %v1348 = vpop.f32.mrb[0].mxu0
      %v1349 = vpop.f32.mrb[0].mxu0
      %v1350 = vadd.f32 0.0, %v1349
      %v1351 = vpop.f32.mrb[0].mxu0
      %1352 = vmatprep.mubr.bf16.mxu0 0
      %1353 = vmatmul.mubr.bf16.gmra.mrb[0].mxu0 %v869
      %v1354 = vpop.f32.mrb[0].mxu0
      %v1355 = vadd.f32 0.0, %v1354
      %v1356 = vpop.f32.mrb[0].mxu0
      %v1357 = vpop.f32.mrb[0].mxu0
      %v1358 = vadd.f32 0.0, %v1357
      %v1359 = vpop.f32.mrb[0].mxu0
      %1360 = vmatprep.mubr.bf16.mxu0 0
      %1361 = vmatmul.mubr.bf16.gmra.mrb[0].mxu0 %v871
      %v1362 = vpop.f32.mrb[0].mxu0
      %v1363 = vadd.f32 0.0, %v1362
      %v1364 = vpop.f32.mrb[0].mxu0
      %v1365 = vpop.f32.mrb[0].mxu0
      %v1366 = vadd.f32 0.0, %v1365
      %v1367 = vpop.f32.mrb[0].mxu0
      %1368 = vmatprep.mubr.bf16.mxu0 0
      %1369 = vmatmul.mubr.bf16.gmra.mrb[0].mxu0 %v873
      %v1370 = vpop.f32.mrb[0].mxu0
      %v1371 = vadd.f32 0.0, %v1370
      %v1372 = vpop.f32.mrb[0].mxu0
      %v1373 = vpop.f32.mrb[0].mxu0
      %v1374 = vadd.f32 0.0, %v1373
      %v1375 = vpop.f32.mrb[0].mxu0
      %1376 = vmatprep.mubr.bf16.mxu0 0
      %1377 = vmatmul.mubr.bf16.gmra.mrb[0].mxu0 %v1219
      %v1378 = vpop.f32.mrb[0].mxu0
      %v1379 = vadd.f32 0.0, %v1378
      %v1380 = vpop.f32.mrb[0].mxu0
      %v1381 = vpop.f32.mrb[0].mxu0
      %v1382 = vadd.f32 0.0, %v1381
      %v1383 = vpop.f32.mrb[0].mxu0
      %1384 = vdwg.mxu0
      %v1385 = vadd.f32 %v1085, %v1259
      %v1386 = vadd.f32 %v1088, %v1262
      %v1387 = vadd.f32 %v1093, %v1267
      %v1388 = vadd.f32 %v1096, %v1270
      %v1389 = vadd.f32 %v1101, %v1275
      %v1390 = vadd.f32 %v1104, %v1278
      %v1391 = vadd.f32 %v1109, %v1283
      %v1392 = vadd.f32 %v1112, %v1286
      %v1393 = vadd.f32 %v1117, %v1291
      %v1394 = vadd.f32 %v1120, %v1294
      %v1395 = vadd.f32 %v1125, %v1299
      %v1396 = vadd.f32 %v1128, %v1302
      %v1397 = vadd.f32 %v1133, %v1307
      %v1398 = vadd.f32 %v1136, %v1310
      %v1399 = vadd.f32 %v1141, %v1315
      %v1400 = vadd.f32 %v1144, %v1318
      %v1401 = vadd.f32 %v1149, %v1323
      %v1402 = vadd.f32 %v1152, %v1326
      %v1403 = vadd.f32 %v1157, %v1331
      %v1404 = vadd.f32 %v1160, %v1334
      %v1405 = vadd.f32 %v1165, %v1339
      %v1406 = vadd.f32 %v1168, %v1342
      %v1407 = vadd.f32 %v1173, %v1347
      %v1408 = vadd.f32 %v1176, %v1350
      %v1409 = vadd.f32 %v1181, %v1355
      %v1410 = vadd.f32 %v1184, %v1358
      %v1411 = vadd.f32 %v1189, %v1363
      %v1412 = vadd.f32 %v1192, %v1366
      %v1413 = vadd.f32 %v1197, %v1371
      %v1414 = vadd.f32 %v1200, %v1374
      %v1415 = vadd.f32 %v1205, %v1379
      %v1416 = vadd.f32 %v1208, %v1382
      %v1417 = vpack.c.bf16 %v1386, %v1385
      %v1418 = vpack.c.bf16 %v1388, %v1387
      %v1419 = vpack.c.bf16 %v1390, %v1389
      %v1420 = vpack.c.bf16 %v1392, %v1391
      %v1421 = vpack.c.bf16 %v1394, %v1393
      %v1422 = vpack.c.bf16 %v1396, %v1395
      %v1423 = vpack.c.bf16 %v1398, %v1397
      %v1424 = vpack.c.bf16 %v1400, %v1399
      %v1425 = vpack.c.bf16 %v1402, %v1401
      %v1426 = vpack.c.bf16 %v1404, %v1403
      %v1427 = vpack.c.bf16 %v1406, %v1405
      %v1428 = vpack.c.bf16 %v1408, %v1407
      %v1429 = vpack.c.bf16 %v1410, %v1409
      %v1430 = vpack.c.bf16 %v1412, %v1411
      %v1431 = vpack.c.bf16 %v1414, %v1413
      %v1432 = vpack.c.bf16 %v1416, %v1415
      %v1449 = vunpack.c.l.b16 %v1417
      %v1450 = vunpack.c.h.b16 %v1417
      %v1451 = vunpack.c.l.b16 %v1418
      %v1452 = vunpack.c.h.b16 %v1418
      %v1453 = vunpack.c.l.b16 %v1419
      %v1454 = vunpack.c.h.b16 %v1419
      %v1455 = vunpack.c.l.b16 %v1420
      %v1456 = vunpack.c.h.b16 %v1420
      %v1457 = vunpack.c.l.b16 %v1421
      %v1458 = vunpack.c.h.b16 %v1421
      %v1459 = vunpack.c.l.b16 %v1422
      %v1460 = vunpack.c.h.b16 %v1422
      %v1461 = vunpack.c.l.b16 %v1423
      %v1462 = vunpack.c.h.b16 %v1423
      %v1463 = vunpack.c.l.b16 %v1424
      %v1464 = vunpack.c.h.b16 %v1424
      %v1465 = vunpack.c.l.b16 %v1425
      %v1466 = vunpack.c.h.b16 %v1425
      %v1467 = vunpack.c.l.b16 %v1426
      %v1468 = vunpack.c.h.b16 %v1426
      %v1469 = vunpack.c.l.b16 %v1427
      %v1470 = vunpack.c.h.b16 %v1427
      %v1471 = vunpack.c.l.b16 %v1428
      %v1472 = vunpack.c.h.b16 %v1428
      %v1473 = vunpack.c.l.b16 %v1429
      %v1474 = vunpack.c.h.b16 %v1429
      %v1475 = vunpack.c.l.b16 %v1430
      %v1476 = vunpack.c.h.b16 %v1430
      %v1477 = vunpack.c.l.b16 %v1431
      %v1478 = vunpack.c.h.b16 %v1431
      %v1479 = vunpack.c.l.b16 %v1432
      %v1480 = vunpack.c.h.b16 %v1432
      %v1481 = vpack.c.b16 %v1449, %v1449
      %v1482 = vpack.c.b16 %v1450, %v1450
      %v1483 = vpack.c.b16 %v1451, %v1451
      %v1484 = vpack.c.b16 %v1452, %v1452
      %v1485 = vpack.c.b16 %v1453, %v1453
      %v1486 = vpack.c.b16 %v1454, %v1454
      %v1487 = vpack.c.b16 %v1455, %v1455
      %v1488 = vpack.c.b16 %v1456, %v1456
      %v1489 = vpack.c.b16 %v1457, %v1457
      %v1490 = vpack.c.b16 %v1458, %v1458
      %v1491 = vpack.c.b16 %v1459, %v1459
      %v1492 = vpack.c.b16 %v1460, %v1460
      %v1493 = vpack.c.b16 %v1461, %v1461
      %v1494 = vpack.c.b16 %v1462, %v1462
      %v1495 = vpack.c.b16 %v1463, %v1463
      %v1496 = vpack.c.b16 %v1464, %v1464
      %v1497 = vpack.c.b16 %v1465, %v1465
      %v1498 = vpack.c.b16 %v1466, %v1466
      %v1499 = vpack.c.b16 %v1467, %v1467
      %v1500 = vpack.c.b16 %v1468, %v1468
      %v1501 = vpack.c.b16 %v1469, %v1469
      %v1502 = vpack.c.b16 %v1470, %v1470
      %v1503 = vpack.c.b16 %v1471, %v1471
      %v1504 = vpack.c.b16 %v1472, %v1472
      %v1505 = vpack.c.b16 %v1473, %v1473
      %v1506 = vpack.c.b16 %v1474, %v1474
      %v1507 = vpack.c.b16 %v1475, %v1475
      %v1508 = vpack.c.b16 %v1476, %v1476
      %v1509 = vpack.c.b16 %v1477, %v1477
      %v1510 = vpack.c.b16 %v1478, %v1478
      %v1511 = vpack.c.b16 %v1479, %v1479
      %v1512 = vpack.c.b16 %v1480, %v1480
      %1545 = vst [vmem:[%s208] sm:$0xf] %v1481
      %1546 = vst [vmem:[%s208 + $0x4] sm:$0xf] %v1482
      %1547 = vst [vmem:[%s208 + $0x8] sm:$0xf] %v1483
      %1548 = vst [vmem:[%s208 + $0xc] sm:$0xf] %v1484
      %1549 = vst [vmem:[%s208 + $0x10] sm:$0xf] %v1485
      %1550 = vst [vmem:[%s208 + $0x14] sm:$0xf] %v1486
      %1551 = vst [vmem:[%s208 + $0x18] sm:$0xf] %v1487
      %1552 = vst [vmem:[%s208 + $0x1c] sm:$0xf] %v1488
      %1553 = vst [vmem:[%s208 + $0x20] sm:$0xf] %v1489
      %1554 = vst [vmem:[%s208 + $0x24] sm:$0xf] %v1490
      %1555 = vst [vmem:[%s208 + $0x28] sm:$0xf] %v1491
      %1556 = vst [vmem:[%s208 + $0x2c] sm:$0xf] %v1492
      %1557 = vst [vmem:[%s208 + $0x30] sm:$0xf] %v1493
      %1558 = vst [vmem:[%s208 + $0x34] sm:$0xf] %v1494
      %1559 = vst [vmem:[%s208 + $0x38] sm:$0xf] %v1495
      %1560 = vst [vmem:[%s208 + $0x3c] sm:$0xf] %v1496
      %1561 = vst [vmem:[%s208 + $0x40] sm:$0xf] %v1497
      %1562 = vst [vmem:[%s208 + $0x44] sm:$0xf] %v1498
      %1563 = vst [vmem:[%s208 + $0x48] sm:$0xf] %v1499
      %1564 = vst [vmem:[%s208 + $0x4c] sm:$0xf] %v1500
      %1565 = vst [vmem:[%s208 + $0x50] sm:$0xf] %v1501
      %1566 = vst [vmem:[%s208 + $0x54] sm:$0xf] %v1502
      %1567 = vst [vmem:[%s208 + $0x58] sm:$0xf] %v1503
      %1568 = vst [vmem:[%s208 + $0x5c] sm:$0xf] %v1504
      %1569 = vst [vmem:[%s208 + $0x60] sm:$0xf] %v1505
      %1570 = vst [vmem:[%s208 + $0x64] sm:$0xf] %v1506
      %1571 = vst [vmem:[%s208 + $0x68] sm:$0xf] %v1507
      %1572 = vst [vmem:[%s208 + $0x6c] sm:$0xf] %v1508
      %1573 = vst [vmem:[%s208 + $0x70] sm:$0xf] %v1509
      %1574 = vst [vmem:[%s208 + $0x74] sm:$0xf] %v1510
      %1575 = vst [vmem:[%s208 + $0x78] sm:$0xf] %v1511
      %1576 = vst [vmem:[%s208 + $0x7c] sm:$0xf] %v1512
      %v1577 = vadd.f32 %v1385, %v1386
      %v1578 = vadd.f32 %v1577, %v1387
      %v1579 = vadd.f32 %v1578, %v1388
      %v1580 = vadd.f32 %v1579, %v1389
      %v1581 = vadd.f32 %v1580, %v1390
      %v1582 = vadd.f32 %v1581, %v1391
      %v1583 = vadd.f32 %v1582, %v1392
      %v1584 = vadd.f32 %v1583, %v1393
      %v1585 = vadd.f32 %v1584, %v1394
      %v1586 = vadd.f32 %v1585, %v1395
      %v1587 = vadd.f32 %v1586, %v1396
      %v1588 = vadd.f32 %v1587, %v1397
      %v1589 = vadd.f32 %v1588, %v1398
      %v1590 = vadd.f32 %v1589, %v1399
      %v1591 = vadd.f32 %v1590, %v1400
      %v1592 = vadd.f32 %v1591, %v1401
      %v1593 = vadd.f32 %v1592, %v1402
      %v1594 = vadd.f32 %v1593, %v1403
      %v1595 = vadd.f32 %v1594, %v1404
      %v1596 = vadd.f32 %v1595, %v1405
      %v1597 = vadd.f32 %v1596, %v1406
      %v1598 = vadd.f32 %v1597, %v1407
      %v1599 = vadd.f32 %v1598, %v1408
      %v1600 = vadd.f32 %v1599, %v1409
      %v1601 = vadd.f32 %v1600, %v1410
      %v1602 = vadd.f32 %v1601, %v1411
      %v1603 = vadd.f32 %v1602, %v1412
      %v1604 = vadd.f32 %v1603, %v1413
      %v1605 = vadd.f32 %v1604, %v1414
      %v1606 = vadd.f32 %v1605, %v1415
      %v1607 = vadd.f32 %v1606, %v1416
      %v1608 = vrot.slane %v1607, 4
      %v1609 = vadd.f32 %v1607, %v1608
      %v1610 = vrot.slane %v1609, 2
      %v1611 = vadd.f32 %v1609, %v1610
      %v1612 = vrot.slane %v1611, 1
      %v1613 = vadd.f32 %v1611, %v1612
      %1614 = vst [vmem:[%s211] sm:$0x1] %v1613
      %v1615 = vmul.f32 %v1385, %v1385
      %v1616 = vmul.f32 %v1386, %v1386
      %v1617 = vmul.f32 %v1387, %v1387
      %v1618 = vmul.f32 %v1388, %v1388
      %v1619 = vmul.f32 %v1389, %v1389
      %v1620 = vmul.f32 %v1390, %v1390
      %v1621 = vmul.f32 %v1391, %v1391
      %v1622 = vmul.f32 %v1392, %v1392
      %v1623 = vmul.f32 %v1393, %v1393
      %v1624 = vmul.f32 %v1394, %v1394
      %v1625 = vmul.f32 %v1395, %v1395
      %v1626 = vmul.f32 %v1396, %v1396
      %v1627 = vmul.f32 %v1397, %v1397
      %v1628 = vmul.f32 %v1398, %v1398
      %v1629 = vmul.f32 %v1399, %v1399
      %v1630 = vmul.f32 %v1400, %v1400
      %v1631 = vmul.f32 %v1401, %v1401
      %v1632 = vmul.f32 %v1402, %v1402
      %v1633 = vmul.f32 %v1403, %v1403
      %v1634 = vmul.f32 %v1404, %v1404
      %v1635 = vmul.f32 %v1405, %v1405
      %v1636 = vmul.f32 %v1406, %v1406
      %v1637 = vmul.f32 %v1407, %v1407
      %v1638 = vmul.f32 %v1408, %v1408
      %v1639 = vmul.f32 %v1409, %v1409
      %v1640 = vmul.f32 %v1410, %v1410
      %v1641 = vmul.f32 %v1411, %v1411
      %v1642 = vmul.f32 %v1412, %v1412
      %v1643 = vmul.f32 %v1413, %v1413
      %v1644 = vmul.f32 %v1414, %v1414
      %v1645 = vmul.f32 %v1415, %v1415
      %v1646 = vmul.f32 %v1416, %v1416
      %v1647 = vadd.f32 %v1615, %v1616
      %v1648 = vadd.f32 %v1647, %v1617
      %v1649 = vadd.f32 %v1648, %v1618
      %v1650 = vadd.f32 %v1649, %v1619
      %v1651 = vadd.f32 %v1650, %v1620
      %v1652 = vadd.f32 %v1651, %v1621
      %v1653 = vadd.f32 %v1652, %v1622
      %v1654 = vadd.f32 %v1653, %v1623
      %v1655 = vadd.f32 %v1654, %v1624
      %v1656 = vadd.f32 %v1655, %v1625
      %v1657 = vadd.f32 %v1656, %v1626
      %v1658 = vadd.f32 %v1657, %v1627
      %v1659 = vadd.f32 %v1658, %v1628
      %v1660 = vadd.f32 %v1659, %v1629
      %v1661 = vadd.f32 %v1660, %v1630
      %v1662 = vadd.f32 %v1661, %v1631
      %v1663 = vadd.f32 %v1662, %v1632
      %v1664 = vadd.f32 %v1663, %v1633
      %v1665 = vadd.f32 %v1664, %v1634
      %v1666 = vadd.f32 %v1665, %v1635
      %v1667 = vadd.f32 %v1666, %v1636
      %v1668 = vadd.f32 %v1667, %v1637
      %v1669 = vadd.f32 %v1668, %v1638
      %v1670 = vadd.f32 %v1669, %v1639
      %v1671 = vadd.f32 %v1670, %v1640
      %v1672 = vadd.f32 %v1671, %v1641
      %v1673 = vadd.f32 %v1672, %v1642
      %v1674 = vadd.f32 %v1673, %v1643
      %v1675 = vadd.f32 %v1674, %v1644
      %v1676 = vadd.f32 %v1675, %v1645
      %v1677 = vadd.f32 %v1676, %v1646
      %v1678 = vrot.slane %v1677, 4
      %v1679 = vadd.f32 %v1677, %v1678
      %v1680 = vrot.slane %v1679, 2
      %v1681 = vadd.f32 %v1679, %v1680
      %v1682 = vrot.slane %v1681, 1
      %v1683 = vadd.f32 %v1681, %v1682
      %1684 = vst [vmem:[%s214] sm:$0x1] %v1683
      %p1685 = scmp.lt.s32.totalorder %s16, 1
      %s1686 = scalar_select %p1685, %s16, 1
      %s1687 = smul.addr %s1686, 32
      %s1688 = smul.addr %s1687, 4
      %s1689 = scalar_lea.vmem %s2, %s1688
      %p1690 = scmp.lt.s32.totalorder %s16, 1
      %s1691 = scalar_select %p1690, %s16, 1
      %s1692 = scalar_lea.vmem %s3, %s1691
      %p1693 = scmp.lt.s32.totalorder %s16, 1
      %s1694 = scalar_select %p1693, %s16, 1
      %s1695 = scalar_lea.vmem %s4, %s1694
      // Predicated region
      $region29: #{unit_forward.2} parent=27 // pred_check
        %p1696 = pneg %p81
      $region30: #{unit_forward.2} parent=27 // pred_check_branch
        %1698 = sbr.rel (%p1696) target = $region32
      $region31: #{unit_forward.2} parent=27 // pred_region
        _
      $region32: #{unit_forward.2} parent=27 // pred_fallthru
        _
      // Predicated region
      $region33: #{unit_forward.2} parent=27 // pred_check
        %p1699 = pneg %p107
      $region34: #{unit_forward.2} parent=27 // pred_check_branch
        %1701 = sbr.rel (%p1699) target = $region36
      $region35: #{unit_forward.2} parent=27 // pred_region
        _
      $region36: #{unit_forward.2} parent=27 // pred_fallthru
        _
      // Predicated region
      $region37: #{unit_forward.2} parent=27 // pred_check
        %p1702 = pneg %p133
      $region38: #{unit_forward.2} parent=27 // pred_check_branch
        %1704 = sbr.rel (%p1702) target = $region40
      $region39: #{unit_forward.2} parent=27 // pred_region
        _
      $region40: #{unit_forward.2} parent=27 // pred_fallthru
        _
    $region28: #{unit_forward.2} parent=5 // pred_fallthru
      _
    %p1705 = scmp.le.s32.totalorder 2, %s11
    // Predicated region
    $region41: #{unit_forward.2} parent=5 // pred_check
      %p1706 = pneg %p1705
    $region42: #{unit_forward.2} parent=5 // pred_check_branch
      %1708 = sbr.rel (%p1706) target = $region44
    $region43: #{unit_forward.2} parent=5 // pred_region
      %s1709 = ssub.s32 %s11, 2
      // Predicated region
      $region45: #{unit_forward.2} parent=43 // pred_check
        %p1710 = pneg %p87
      $region46: #{unit_forward.2} parent=43 // pred_check_branch
        %1712 = sbr.rel (%p1710) target = $region48
      $region47: #{unit_forward.2} parent=43 // pred_region
        %p1713 = scmp.lt.s32.totalorder %s17, 1
        %s1714 = scalar_select %p1713, %s17, 1
        %s1715 = smul.addr %s1714, 32
        %s1716 = smul.addr %s1715, 4
        %s1717 = scalar_lea.vmem %s2, %s1716
      $region48: #{unit_forward.2} parent=43 // pred_fallthru
        _
      // Predicated region
      $region49: #{unit_forward.2} parent=43 // pred_check
        %p1718 = pneg %p113
      $region50: #{unit_forward.2} parent=43 // pred_check_branch
        %1720 = sbr.rel (%p1718) target = $region52
      $region51: #{unit_forward.2} parent=43 // pred_region
        %p1721 = scmp.lt.s32.totalorder %s17, 1
        %s1722 = scalar_select %p1721, %s17, 1
        %s1723 = scalar_lea.vmem %s3, %s1722
      $region52: #{unit_forward.2} parent=43 // pred_fallthru
        _
      // Predicated region
      $region53: #{unit_forward.2} parent=43 // pred_check
        %p1724 = pneg %p139
      $region54: #{unit_forward.2} parent=43 // pred_check_branch
        %1726 = sbr.rel (%p1724) target = $region56
      $region55: #{unit_forward.2} parent=43 // pred_region
        %p1727 = scmp.lt.s32.totalorder %s17, 1
        %s1728 = scalar_select %p1727, %s17, 1
        %s1729 = scalar_lea.vmem %s4, %s1728
      $region56: #{unit_forward.2} parent=43 // pred_fallthru
        _
    $region44: #{unit_forward.2} parent=5 // pred_fallthru
      _
  $region6: #{unit_forward.2} parent=0 // loop_footer
    %s15 = sadd.s32 1, %s11
  $region7: #{unit_forward.2} parent=0 // loop_footer_branch
    %10 = sbr.rel target = $region3
  $region8: #{unit_forward.2} parent=0 // loop_exit
    _

</llo_original>
